<compile_context>
chip_gen: v6e
topology: v6e:2x2x1
jax: 0.10.0
libtpu: 0.0.40
codegen_flags: <defaults>
</compile_context>

<pallas_src>
import functools

import jax
import jax.numpy as jnp
from jax.experimental import pallas as pl
from jax.experimental.pallas import tpu as pltpu

LN_EPS = 1e-5   # PyTorch nn.LayerNorm default
LANE = 128


def _round_up(n, m):
    return ((n + m - 1) // m) * m


def _pad2d(a, rows, cols):
    return jnp.pad(a, ((0, rows - a.shape[0]), (0, cols - a.shape[1])))


def _pad_row(v, cols):
    v = v.reshape(1, -1)
    return jnp.pad(v, ((0, 0), (0, cols - v.shape[1])))


# ----------------------------------------------------------------------------
# Kernel body: one (batch-tile, layer) grid point.
# ----------------------------------------------------------------------------
def _fused_forward_kernel(
    x_ref, in_w_ref, in_b_ref,
    wa_ref, ba_ref, w1_ref, b1_ref, w2_ref, b2_ref,
    g1_ref, be1_ref, g2_ref, be2_ref,
    out_w_ref, out_b_ref,
    o_ref,
    h_ref,                       # VMEM scratch: running activation (TB, Hp) f32
    *, hidden_real,
):
    f32 = jnp.float32
    bf16 = jnp.bfloat16
    l = pl.program_id(1)
    last_l = pl.num_programs(1) - 1

    # ---- input_proj (only on the first layer iteration of this batch tile) ----
    @pl.when(l == 0)
    def _():
        h_ref[...] = (
            jnp.dot(x_ref[...].astype(bf16), in_w_ref[...],
                    preferred_element_type=f32)
            + in_b_ref[...]
        )

    x = h_ref[...]

    # Lane mask selecting the real hidden features (padded lanes are exactly 0
    # everywhere by construction; only the LN centering needs the mask).
    lane = jax.lax.broadcasted_iota(jnp.int32, x.shape, dimension=1)
    feat_mask = lane < hidden_real
    inv_d = f32(1.0 / hidden_real)

    def add_layernorm(a, b, gamma, beta):
        h = a + b                                                  # padded lanes stay 0
        mean = jnp.sum(h, axis=-1, keepdims=True) * inv_d          # real-feature mean
        c = jnp.where(feat_mask, h - mean, 0.0)
        var = jnp.sum(c * c, axis=-1, keepdims=True) * inv_d       # biased variance (torch)
        return c * jax.lax.rsqrt(var + LN_EPS) * gamma + beta      # padded lanes -> 0

    # ---- attention (seq_len == 1): pre-folded out_proj(v_proj(x)) = x @ Wa + ba ----
    attn = jnp.dot(x.astype(bf16), wa_ref[...], preferred_element_type=f32) + ba_ref[...]
    x = add_layernorm(x, attn, g1_ref[...], be1_ref[...])          # norm1(x + attn)

    # ---- FFN (dropout = identity in eval mode) ----
    ffn = jnp.dot(x.astype(bf16), w1_ref[...], preferred_element_type=f32) + b1_ref[...]
    ffn = jnp.maximum(ffn, 0.0)                                    # ReLU
    ffn = jnp.dot(ffn.astype(bf16), w2_ref[...], preferred_element_type=f32) + b2_ref[...]
    x = add_layernorm(x, ffn, g2_ref[...], be2_ref[...])           # norm2(x + ffn)

    h_ref[...] = x

    # ---- output_proj (only on the last layer iteration of this batch tile) ----
    @pl.when(l == last_l)
    def _():
        out = jnp.dot(x.astype(bf16), out_w_ref[...],
                      preferred_element_type=f32) + out_b_ref[...]
        o_ref[...] = out.astype(o_ref.dtype)


# ----------------------------------------------------------------------------
# Parameter init (deterministic, PyTorch-layout-equivalent; weights are (Din, Dout))
# ----------------------------------------------------------------------------
def init_params(key, input_size, hidden_size, output_size, num_layers):
    def dense(k, din, dout, scale=0.02):
        kw, kb = jax.random.split(k)
        w = scale * jax.random.normal(kw, (din, dout), jnp.float32)
        b = scale * jax.random.normal(kb, (dout,), jnp.float32)
        return w, b

    keys = jax.random.split(key, 2 + num_layers)
    in_w, in_b = dense(keys[0], input_size, hidden_size)
    out_w, out_b = dense(keys[1], hidden_size, output_size)

    blocks = []
    for l in range(num_layers):
        ks = jax.random.split(keys[2 + l], 4)
        wv, bv = dense(ks[0], hidden_size, hidden_size)          # attn V proj
        wo, bo = dense(ks[1], hidden_size, hidden_size)          # attn out proj
        w1, b1 = dense(ks[2], hidden_size, 4 * hidden_size)      # ffn fc1
        w2, b2 = dense(ks[3], 4 * hidden_size, hidden_size)      # ffn fc2
        blocks.append(dict(
            wv=wv, bv=bv, wo=wo, bo=bo,
            w1=w1, b1=b1, w2=w2, b2=b2,
            g1=jnp.ones((hidden_size,), jnp.float32),
            be1=jnp.zeros((hidden_size,), jnp.float32),
            g2=jnp.ones((hidden_size,), jnp.float32),
            be2=jnp.zeros((hidden_size,), jnp.float32),
        ))
    return dict(in_w=in_w, in_b=in_b, out_w=out_w, out_b=out_b, blocks=blocks)


# ----------------------------------------------------------------------------
# One-time host-side precompute: fold attention, pad lane-dense, cast matmul
# operands to bf16, stack layers along a leading layer axis (for streaming).
# ----------------------------------------------------------------------------
def fuse_and_pad_params(params, input_size, hidden_size, output_size):
    H = hidden_size
    Ip = _round_up(input_size, LANE)
    Hp = _round_up(H, LANE)
    Fp = _round_up(4 * H, LANE)
    Op = _round_up(output_size, LANE)
    bf16 = jnp.bfloat16

    fused = dict(
        in_w=_pad2d(params["in_w"], Ip, Hp).astype(bf16),
        in_b=_pad_row(params["in_b"], Hp),
        out_w=_pad2d(params["out_w"], Hp, Op).astype(bf16),
        out_b=_pad_row(params["out_b"], Op),
    )

    wa, ba, w1, b1, w2, b2, g1, be1, g2, be2 = ([] for _ in range(10))
    for blk in params["blocks"]:
        # exact fold of out_proj(v_proj(x)) for seq_len == 1 (done in f32, then cast)
        w_attn = blk["wv"] @ blk["wo"]
        b_attn = blk["bv"] @ blk["wo"] + blk["bo"]
        wa.append(_pad2d(w_attn, Hp, Hp).astype(bf16));      ba.append(_pad_row(b_attn, Hp))
        w1.append(_pad2d(blk["w1"], Hp, Fp).astype(bf16));   b1.append(_pad_row(blk["b1"], Fp))
        w2.append(_pad2d(blk["w2"], Fp, Hp).astype(bf16));   b2.append(_pad_row(blk["b2"], Hp))
        g1.append(_pad_row(blk["g1"], Hp));                  be1.append(_pad_row(blk["be1"], Hp))
        g2.append(_pad_row(blk["g2"], Hp));                  be2.append(_pad_row(blk["be2"], Hp))

    stack = lambda xs: jnp.stack(xs, axis=0)
    fused.update(wa=stack(wa), ba=stack(ba), w1=stack(w1), b1=stack(b1),
                 w2=stack(w2), b2=stack(b2), g1=stack(g1), be1=stack(be1),
                 g2=stack(g2), be2=stack(be2))
    return fused


# ----------------------------------------------------------------------------
# Forward pass: ONE pallas_call over a (batch-tile, layer) grid.
# ----------------------------------------------------------------------------
def transformer_mlp_forward(x, fused, *, input_size, hidden_size, output_size, num_layers):
    B = x.shape[0]
    Ip, Hp = fused["in_w"].shape
    Fp = fused["w1"].shape[-1]
    Op = fused["out_w"].shape[1]

    # Batch tile: multiple of 16 (bf16 sublane packing), up to 256 rows (fills the
    # 2x256 MXU on v6e/v7x; 128-multiples are fine for v5e's 4x128 MXU).
    TB = min(256, _round_up(max(B, 1), 16))
    Bp = _round_up(B, TB)
    nb = Bp // TB

    x_pad = jnp.pad(x.astype(jnp.float32), ((0, Bp - B), (0, Ip - input_size)))

    kernel = functools.partial(_fused_forward_kernel, hidden_real=hidden_size)

    const2 = lambda b, l: (0, 0)      # resident across the whole grid
    batch2 = lambda b, l: (b, 0)      # resident across the layer axis, tiled over batch
    layer3 = lambda b, l: (l, 0, 0)   # streamed per layer

    in_specs = [
        pl.BlockSpec((TB, Ip), batch2),            # x
        pl.BlockSpec((Ip, Hp), const2),            # in_w
        pl.BlockSpec((1, Hp), const2),             # in_b
        pl.BlockSpec((None, Hp, Hp), layer3),      # wa
        pl.BlockSpec((None, 1, Hp), layer3),       # ba
        pl.BlockSpec((None, Hp, Fp), layer3),      # w1
        pl.BlockSpec((None, 1, Fp), layer3),       # b1
        pl.BlockSpec((None, Fp, Hp), layer3),      # w2
        pl.BlockSpec((None, 1, Hp), layer3),       # b2
        pl.BlockSpec((None, 1, Hp), layer3),       # g1
        pl.BlockSpec((None, 1, Hp), layer3),       # be1
        pl.BlockSpec((None, 1, Hp), layer3),       # g2
        pl.BlockSpec((None, 1, Hp), layer3),       # be2
        pl.BlockSpec((Hp, Op), const2),            # out_w
        pl.BlockSpec((1, Op), const2),             # out_b
    ]
    out_spec = pl.BlockSpec((TB, Op), batch2)

    # Explicit VMEM budget: resident projections + double-buffered streamed layer
    # + double-buffered x/out tiles + activation scratch, with headroom.
    def nbytes(a):
        return int(a.size) * a.dtype.itemsize
    per_layer = sum(nbytes(fused[k]) // num_layers
                    for k in ("wa", "ba", "w1", "b1", "w2", "b2",
                              "g1", "be1", "g2", "be2"))
    resident = sum(nbytes(fused[k]) for k in ("in_w", "in_b", "out_w", "out_b"))
    tiles = TB * Ip * 4 + TB * Op * 4
    scratch = TB * Hp * 4
    vmem_limit = int(1.5 * (2 * per_layer + 2 * resident + 2 * tiles + scratch)) + (2 << 20)
    vmem_limit = min(vmem_limit, 64 << 20)   # stay within v7x physical VMEM

    out_pad = pl.pallas_call(
        kernel,
        out_shape=jax.ShapeDtypeStruct((Bp, Op), jnp.float32),
        grid_spec=pltpu.PrefetchScalarGridSpec(
            num_scalar_prefetch=0,
            grid=(nb, num_layers),
            in_specs=in_specs,
            out_specs=out_spec,
            scratch_shapes=[pltpu.VMEM((TB, Hp), jnp.float32)],
        ),
        compiler_params=pltpu.CompilerParams(
            dimension_semantics=("parallel", "arbitrary"),
            vmem_limit_bytes=vmem_limit,
        ),
    )(x_pad,
      fused["in_w"], fused["in_b"],
      fused["wa"], fused["ba"], fused["w1"], fused["b1"], fused["w2"], fused["b2"],
      fused["g1"], fused["be1"], fused["g2"], fused["be2"],
      fused["out_w"], fused["out_b"])

    return out_pad[:B, :output_size]


# ----------------------------------------------------------------------------
# Pure-JAX reference (unfused, unpadded, f32) for correctness checking.
# ----------------------------------------------------------------------------
def _reference_forward(x, params):
    def ln(h, g, b):
        mean = jnp.mean(h, axis=-1, keepdims=True)
        var = jnp.mean((h - mean) ** 2, axis=-1, keepdims=True)
        return (h - mean) * jax.lax.rsqrt(var + LN_EPS) * g + b

    x = x @ params["in_w"] + params["in_b"]
    for blk in params["blocks"]:
        attn = (x @ blk["wv"] + blk["bv"]) @ blk["wo"] + blk["bo"]
        x = ln(x + attn, blk["g1"], blk["be1"])
        ffn = jnp.maximum(x @ blk["w1"] + blk["b1"], 0.0)
        ffn = ffn @ blk["w2"] + blk["b2"]
        x = ln(x + ffn, blk["g2"], blk["be2"])
    return x @ params["out_w"] + params["out_b"]


if __name__ == "__main__":
    # Small shapes consistent with the module's forward: x is (batch, input_size).
    B, INPUT_SIZE, HIDDEN_SIZE, OUTPUT_SIZE, NUM_LAYERS = 8, 16, 32, 8, 3

    key = jax.random.PRNGKey(0)
    kx, kp = jax.random.split(key)
    x = jax.random.normal(kx, (B, INPUT_SIZE), jnp.float32)

    params = init_params(kp, INPUT_SIZE, HIDDEN_SIZE, OUTPUT_SIZE, NUM_LAYERS)
    fused = fuse_and_pad_params(params, INPUT_SIZE, HIDDEN_SIZE, OUTPUT_SIZE)

    out = transformer_mlp_forward(
        x, fused,
        input_size=INPUT_SIZE, hidden_size=HIDDEN_SIZE,
        output_size=OUTPUT_SIZE, num_layers=NUM_LAYERS)
    out = jax.block_until_ready(out)

    assert out.shape == (B, OUTPUT_SIZE), out.shape
    assert jnp.all(jnp.isfinite(out)), "non-finite output"

    ref = _reference_forward(x, params)
    max_err = float(jnp.max(jnp.abs(out - ref)))
    # bf16 matmul operands vs f32 reference -> loosened tolerance (per review).
    assert jnp.allclose(out, ref, rtol=5e-2, atol=5e-2), f"mismatch vs reference: {max_err}"

    print("KERNEL_OK")
</pallas_src>

<mosaic_0001>
module attributes {stable_mosaic.version = 11 : i64} {
  func.func @_fused_forward_kernel(%arg0: i32, %arg1: i32, %arg2: memref<16x128xf32, #tpu.memory_space<vmem>>, %arg3: memref<128x128xbf16, #tpu.memory_space<vmem>>, %arg4: memref<1x128xf32, #tpu.memory_space<vmem>>, %arg5: memref<1x128x128xbf16, #tpu.memory_space<vmem>>, %arg6: memref<1x1x128xf32, #tpu.memory_space<vmem>>, %arg7: memref<1x128x128xbf16, #tpu.memory_space<vmem>>, %arg8: memref<1x1x128xf32, #tpu.memory_space<vmem>>, %arg9: memref<1x128x128xbf16, #tpu.memory_space<vmem>>, %arg10: memref<1x1x128xf32, #tpu.memory_space<vmem>>, %arg11: memref<1x1x128xf32, #tpu.memory_space<vmem>>, %arg12: memref<1x1x128xf32, #tpu.memory_space<vmem>>, %arg13: memref<1x1x128xf32, #tpu.memory_space<vmem>>, %arg14: memref<1x1x128xf32, #tpu.memory_space<vmem>>, %arg15: memref<128x128xbf16, #tpu.memory_space<vmem>>, %arg16: memref<1x128xf32, #tpu.memory_space<vmem>>, %arg17: memref<16x128xf32, #tpu.memory_space<vmem>>, %arg18: memref<16x128xf32, #tpu.memory_space<vmem>>) attributes {dimension_semantics = [#tpu.dimension_semantics<parallel>, #tpu.dimension_semantics<arbitrary>], iteration_bounds = array<i64: 1, 3>, scalar_prefetch = 0 : i64, scratch_operands = 1 : i64, tpu.core_type = #tpu.core_type<tc>, window_params = [{transform_indices = @transform_0, window_bounds = array<i64: 16, 128>}, {pipeline_mode = #tpu.pipeline_mode<synchronous>, transform_indices = @transform_1, window_bounds = array<i64: 128, 128>}, {pipeline_mode = #tpu.pipeline_mode<synchronous>, transform_indices = @transform_2, window_bounds = array<i64: 1, 128>}, {transform_indices = @transform_3, window_bounds = array<i64: 1, 128, 128>}, {transform_indices = @transform_4, window_bounds = array<i64: 1, 1, 128>}, {transform_indices = @transform_5, window_bounds = array<i64: 1, 128, 128>}, {transform_indices = @transform_6, window_bounds = array<i64: 1, 1, 128>}, {transform_indices = @transform_7, window_bounds = array<i64: 1, 128, 128>}, {transform_indices = @transform_8, window_bounds = array<i64: 1, 1, 128>}, {transform_indices = @transform_9, window_bounds = array<i64: 1, 1, 128>}, {transform_indices = @transform_10, window_bounds = array<i64: 1, 1, 128>}, {transform_indices = @transform_11, window_bounds = array<i64: 1, 1, 128>}, {transform_indices = @transform_12, window_bounds = array<i64: 1, 1, 128>}, {pipeline_mode = #tpu.pipeline_mode<synchronous>, transform_indices = @transform_13, window_bounds = array<i64: 128, 128>}, {pipeline_mode = #tpu.pipeline_mode<synchronous>, transform_indices = @transform_14, window_bounds = array<i64: 1, 128>}, {transform_indices = @transform_15, window_bounds = array<i64: 16, 128>}]} {
    %c0_i32 = arith.constant 0 : i32
    %0 = arith.cmpi eq, %arg1, %c0_i32 : i32
    %1 = arith.extui %0 : i1 to i32
    %c0_i32_0 = arith.constant 0 : i32
    %2 = arith.cmpi ne, %1, %c0_i32_0 : i32
    scf.if %2 {
      %c0_50 = arith.constant 0 : index
      %c0_51 = arith.constant 0 : index
      %91 = vector.load %arg2[%c0_50, %c0_51] : memref<16x128xf32, #tpu.memory_space<vmem>>, vector<16x128xf32>
      %92 = arith.truncf %91 : vector<16x128xf32> to vector<16x128xbf16>
      %c0_52 = arith.constant 0 : index
      %c0_53 = arith.constant 0 : index
      %93 = vector.load %arg3[%c0_52, %c0_53] : memref<128x128xbf16, #tpu.memory_space<vmem>>, vector<128x128xbf16>
      %cst_54 = arith.constant dense<0.000000e+00> : vector<16x128xf32>
      %94 = tpu.matmul %92, %93, %cst_54 {dimension_numbers = #tpu.dot_dimension_numbers<[1], [0], [0], [1], [0, 0, 1, 1], [], []>} : vector<16x128xbf16>, vector<128x128xbf16>, vector<16x128xf32> -> vector<16x128xf32>
      %c0_55 = arith.constant 0 : index
      %c0_56 = arith.constant 0 : index
      %95 = vector.load %arg4[%c0_55, %c0_56] : memref<1x128xf32, #tpu.memory_space<vmem>>, vector<1x128xf32>
      %96 = vector.broadcast %95 : vector<1x128xf32> to vector<16x128xf32>
      %97 = arith.addf %94, %96 : vector<16x128xf32>
      %c0_57 = arith.constant 0 : index
      %c0_58 = arith.constant 0 : index
      %98 = vector.load %arg18[%c0_57, %c0_58] : memref<16x128xf32, #tpu.memory_space<vmem>>, vector<16x128xf32>
      tpu.vector_store %arg18[%c0_57, %c0_58], %97 {strides = array<i32>} : memref<16x128xf32, #tpu.memory_space<vmem>>, vector<16x128xf32>,
    } else {
    }
    %c0 = arith.constant 0 : index
    %c0_1 = arith.constant 0 : index
    %3 = vector.load %arg18[%c0, %c0_1] : memref<16x128xf32, #tpu.memory_space<vmem>>, vector<16x128xf32>
    %4 = tpu.iota {dimensions = array<i32: 1>} : vector<16x128xi32>
    %c32_i32 = arith.constant 32 : i32
    %5 = vector.broadcast %c32_i32 : i32 to vector<16x128xi32>
    %6 = arith.cmpi slt, %4, %5 : vector<16x128xi32>
    %7 = arith.truncf %3 : vector<16x128xf32> to vector<16x128xbf16>
    %c0_2 = arith.constant 0 : index
    %c0_3 = arith.constant 0 : index
    %c0_4 = arith.constant 0 : index
    %8 = vector.load %arg5[%c0_2, %c0_3, %c0_4] : memref<1x128x128xbf16, #tpu.memory_space<vmem>>, vector<1x128x128xbf16>
    %9 = vector.shape_cast %8 : vector<1x128x128xbf16> to vector<128x128xbf16>
    %cst = arith.constant dense<0.000000e+00> : vector<16x128xf32>
    %10 = tpu.matmul %7, %9, %cst {dimension_numbers = #tpu.dot_dimension_numbers<[1], [0], [0], [1], [0, 0, 1, 1], [], []>} : vector<16x128xbf16>, vector<128x128xbf16>, vector<16x128xf32> -> vector<16x128xf32>
    %c0_5 = arith.constant 0 : index
    %c0_6 = arith.constant 0 : index
    %c0_7 = arith.constant 0 : index
    %11 = vector.load %arg6[%c0_5, %c0_6, %c0_7] : memref<1x1x128xf32, #tpu.memory_space<vmem>>, vector<1x1x128xf32>
    %12 = vector.shape_cast %11 : vector<1x1x128xf32> to vector<1x128xf32>
    %13 = vector.broadcast %12 : vector<1x128xf32> to vector<16x128xf32>
    %14 = arith.addf %10, %13 : vector<16x128xf32>
    %c0_8 = arith.constant 0 : index
    %c0_9 = arith.constant 0 : index
    %c0_10 = arith.constant 0 : index
    %15 = vector.load %arg11[%c0_8, %c0_9, %c0_10] : memref<1x1x128xf32, #tpu.memory_space<vmem>>, vector<1x1x128xf32>
    %16 = vector.shape_cast %15 : vector<1x1x128xf32> to vector<1x128xf32>
    %c0_11 = arith.constant 0 : index
    %c0_12 = arith.constant 0 : index
    %c0_13 = arith.constant 0 : index
    %17 = vector.load %arg12[%c0_11, %c0_12, %c0_13] : memref<1x1x128xf32, #tpu.memory_space<vmem>>, vector<1x1x128xf32>
    %18 = vector.shape_cast %17 : vector<1x1x128xf32> to vector<1x128xf32>
    %19 = arith.addf %3, %14 : vector<16x128xf32>
    %cst_14 = arith.constant dense<0.000000e+00> : vector<16xf32>
    %20 = vector.multi_reduction <add>, %19, %cst_14 [1] : vector<16x128xf32> to vector<16xf32>
    %21 = vector.shape_cast %20 : vector<16xf32> to vector<16x1xf32>
    %cst_15 = arith.constant 3.125000e-02 : f32
    %22 = vector.broadcast %cst_15 : f32 to vector<16x1xf32>
    %23 = arith.mulf %21, %22 : vector<16x1xf32>
    %24 = vector.broadcast %23 : vector<16x1xf32> to vector<16x128xf32>
    %25 = arith.subf %19, %24 : vector<16x128xf32>
    %cst_16 = arith.constant 0.000000e+00 : f32
    %26 = vector.broadcast %cst_16 : f32 to vector<16x128xf32>
    %27 = arith.select %6, %25, %26 : vector<16x128xi1>, vector<16x128xf32>
    %28 = arith.mulf %27, %27 : vector<16x128xf32>
    %cst_17 = arith.constant dense<0.000000e+00> : vector<16xf32>
    %29 = vector.multi_reduction <add>, %28, %cst_17 [1] : vector<16x128xf32> to vector<16xf32>
    %30 = vector.shape_cast %29 : vector<16xf32> to vector<16x1xf32>
    %cst_18 = arith.constant 3.125000e-02 : f32
    %31 = vector.broadcast %cst_18 : f32 to vector<16x1xf32>
    %32 = arith.mulf %30, %31 : vector<16x1xf32>
    %cst_19 = arith.constant 9.99999974E-6 : f32
    %33 = vector.broadcast %cst_19 : f32 to vector<16x1xf32>
    %34 = arith.addf %32, %33 : vector<16x1xf32>
    %35 = math.rsqrt %34 : vector<16x1xf32>
    %36 = vector.broadcast %35 : vector<16x1xf32> to vector<16x128xf32>
    %37 = arith.mulf %27, %36 : vector<16x128xf32>
    %38 = vector.broadcast %16 : vector<1x128xf32> to vector<16x128xf32>
    %39 = arith.mulf %37, %38 : vector<16x128xf32>
    %40 = vector.broadcast %18 : vector<1x128xf32> to vector<16x128xf32>
    %41 = arith.addf %39, %40 : vector<16x128xf32>
    %42 = arith.truncf %41 : vector<16x128xf32> to vector<16x128xbf16>
    %c0_20 = arith.constant 0 : index
    %c0_21 = arith.constant 0 : index
    %c0_22 = arith.constant 0 : index
    %43 = vector.load %arg7[%c0_20, %c0_21, %c0_22] : memref<1x128x128xbf16, #tpu.memory_space<vmem>>, vector<1x128x128xbf16>
    %44 = vector.shape_cast %43 : vector<1x128x128xbf16> to vector<128x128xbf16>
    %cst_23 = arith.constant dense<0.000000e+00> : vector<16x128xf32>
    %45 = tpu.matmul %42, %44, %cst_23 {dimension_numbers = #tpu.dot_dimension_numbers<[1], [0], [0], [1], [0, 0, 1, 1], [], []>} : vector<16x128xbf16>, vector<128x128xbf16>, vector<16x128xf32> -> vector<16x128xf32>
    %c0_24 = arith.constant 0 : index
    %c0_25 = arith.constant 0 : index
    %c0_26 = arith.constant 0 : index
    %46 = vector.load %arg8[%c0_24, %c0_25, %c0_26] : memref<1x1x128xf32, #tpu.memory_space<vmem>>, vector<1x1x128xf32>
    %47 = vector.shape_cast %46 : vector<1x1x128xf32> to vector<1x128xf32>
    %48 = vector.broadcast %47 : vector<1x128xf32> to vector<16x128xf32>
    %49 = arith.addf %45, %48 : vector<16x128xf32>
    %cst_27 = arith.constant 0.000000e+00 : f32
    %50 = vector.broadcast %cst_27 : f32 to vector<16x128xf32>
    %51 = arith.maximumf %49, %50 : vector<16x128xf32>
    %52 = arith.truncf %51 : vector<16x128xf32> to vector<16x128xbf16>
    %c0_28 = arith.constant 0 : index
    %c0_29 = arith.constant 0 : index
    %c0_30 = arith.constant 0 : index
    %53 = vector.load %arg9[%c0_28, %c0_29, %c0_30] : memref<1x128x128xbf16, #tpu.memory_space<vmem>>, vector<1x128x128xbf16>
    %54 = vector.shape_cast %53 : vector<1x128x128xbf16> to vector<128x128xbf16>
    %cst_31 = arith.constant dense<0.000000e+00> : vector<16x128xf32>
    %55 = tpu.matmul %52, %54, %cst_31 {dimension_numbers = #tpu.dot_dimension_numbers<[1], [0], [0], [1], [0, 0, 1, 1], [], []>} : vector<16x128xbf16>, vector<128x128xbf16>, vector<16x128xf32> -> vector<16x128xf32>
    %c0_32 = arith.constant 0 : index
    %c0_33 = arith.constant 0 : index
    %c0_34 = arith.constant 0 : index
    %56 = vector.load %arg10[%c0_32, %c0_33, %c0_34] : memref<1x1x128xf32, #tpu.memory_space<vmem>>, vector<1x1x128xf32>
    %57 = vector.shape_cast %56 : vector<1x1x128xf32> to vector<1x128xf32>
    %58 = vector.broadcast %57 : vector<1x128xf32> to vector<16x128xf32>
    %59 = arith.addf %55, %58 : vector<16x128xf32>
    %c0_35 = arith.constant 0 : index
    %c0_36 = arith.constant 0 : index
    %c0_37 = arith.constant 0 : index
    %60 = vector.load %arg13[%c0_35, %c0_36, %c0_37] : memref<1x1x128xf32, #tpu.memory_space<vmem>>, vector<1x1x128xf32>
    %61 = vector.shape_cast %60 : vector<1x1x128xf32> to vector<1x128xf32>
    %c0_38 = arith.constant 0 : index
    %c0_39 = arith.constant 0 : index
    %c0_40 = arith.constant 0 : index
    %62 = vector.load %arg14[%c0_38, %c0_39, %c0_40] : memref<1x1x128xf32, #tpu.memory_space<vmem>>, vector<1x1x128xf32>
    %63 = vector.shape_cast %62 : vector<1x1x128xf32> to vector<1x128xf32>
    %64 = arith.addf %41, %59 : vector<16x128xf32>
    %cst_41 = arith.constant dense<0.000000e+00> : vector<16xf32>
    %65 = vector.multi_reduction <add>, %64, %cst_41 [1] : vector<16x128xf32> to vector<16xf32>
    %66 = vector.shape_cast %65 : vector<16xf32> to vector<16x1xf32>
    %cst_42 = arith.constant 3.125000e-02 : f32
    %67 = vector.broadcast %cst_42 : f32 to vector<16x1xf32>
    %68 = arith.mulf %66, %67 : vector<16x1xf32>
    %69 = vector.broadcast %68 : vector<16x1xf32> to vector<16x128xf32>
    %70 = arith.subf %64, %69 : vector<16x128xf32>
    %cst_43 = arith.constant 0.000000e+00 : f32
    %71 = vector.broadcast %cst_43 : f32 to vector<16x128xf32>
    %72 = arith.select %6, %70, %71 : vector<16x128xi1>, vector<16x128xf32>
    %73 = arith.mulf %72, %72 : vector<16x128xf32>
    %cst_44 = arith.constant dense<0.000000e+00> : vector<16xf32>
    %74 = vector.multi_reduction <add>, %73, %cst_44 [1] : vector<16x128xf32> to vector<16xf32>
    %75 = vector.shape_cast %74 : vector<16xf32> to vector<16x1xf32>
    %cst_45 = arith.constant 3.125000e-02 : f32
    %76 = vector.broadcast %cst_45 : f32 to vector<16x1xf32>
    %77 = arith.mulf %75, %76 : vector<16x1xf32>
    %cst_46 = arith.constant 9.99999974E-6 : f32
    %78 = vector.broadcast %cst_46 : f32 to vector<16x1xf32>
    %79 = arith.addf %77, %78 : vector<16x1xf32>
    %80 = math.rsqrt %79 : vector<16x1xf32>
    %81 = vector.broadcast %80 : vector<16x1xf32> to vector<16x128xf32>
    %82 = arith.mulf %72, %81 : vector<16x128xf32>
    %83 = vector.broadcast %61 : vector<1x128xf32> to vector<16x128xf32>
    %84 = arith.mulf %82, %83 : vector<16x128xf32>
    %85 = vector.broadcast %63 : vector<1x128xf32> to vector<16x128xf32>
    %86 = arith.addf %84, %85 : vector<16x128xf32>
    %c0_47 = arith.constant 0 : index
    %c0_48 = arith.constant 0 : index
    %87 = vector.load %arg18[%c0_47, %c0_48] : memref<16x128xf32, #tpu.memory_space<vmem>>, vector<16x128xf32>
    tpu.vector_store %arg18[%c0_47, %c0_48], %86 {strides = array<i32>} : memref<16x128xf32, #tpu.memory_space<vmem>>, vector<16x128xf32>,
    %c2_i32 = arith.constant 2 : i32
    %88 = arith.cmpi eq, %arg1, %c2_i32 : i32
    %89 = arith.extui %88 : i1 to i32
    %c0_i32_49 = arith.constant 0 : i32
    %90 = arith.cmpi ne, %89, %c0_i32_49 : i32
    scf.if %90 {
      %91 = arith.truncf %86 : vector<16x128xf32> to vector<16x128xbf16>
      %c0_50 = arith.constant 0 : index
      %c0_51 = arith.constant 0 : index
      %92 = vector.load %arg15[%c0_50, %c0_51] : memref<128x128xbf16, #tpu.memory_space<vmem>>, vector<128x128xbf16>
      %cst_52 = arith.constant dense<0.000000e+00> : vector<16x128xf32>
      %93 = tpu.matmul %91, %92, %cst_52 {dimension_numbers = #tpu.dot_dimension_numbers<[1], [0], [0], [1], [0, 0, 1, 1], [], []>} : vector<16x128xbf16>, vector<128x128xbf16>, vector<16x128xf32> -> vector<16x128xf32>
      %c0_53 = arith.constant 0 : index
      %c0_54 = arith.constant 0 : index
      %94 = vector.load %arg16[%c0_53, %c0_54] : memref<1x128xf32, #tpu.memory_space<vmem>>, vector<1x128xf32>
      %95 = vector.broadcast %94 : vector<1x128xf32> to vector<16x128xf32>
      %96 = arith.addf %93, %95 : vector<16x128xf32>
      %c0_55 = arith.constant 0 : index
      %c0_56 = arith.constant 0 : index
      %97 = vector.load %arg17[%c0_55, %c0_56] : memref<16x128xf32, #tpu.memory_space<vmem>>, vector<16x128xf32>
      tpu.vector_store %arg17[%c0_55, %c0_56], %96 {strides = array<i32>} : memref<16x128xf32, #tpu.memory_space<vmem>>, vector<16x128xf32>,
    } else {
    }
    return
  }
  func.func @transform_0(%arg0: i32, %arg1: i32) -> (i32, i32) {
    %c0_i32 = arith.constant 0 : i32
    %c0_i32_0 = arith.constant 0 : i32
    return %arg0, %c0_i32 : i32, i32
  }
  func.func @transform_1(%arg0: i32, %arg1: i32) -> (i32, i32) {
    %c0_i32 = arith.constant 0 : i32
    %c0_i32_0 = arith.constant 0 : i32
    %c0_i32_1 = arith.constant 0 : i32
    return %c0_i32, %c0_i32_0 : i32, i32
  }
  func.func @transform_2(%arg0: i32, %arg1: i32) -> (i32, i32) {
    %c0_i32 = arith.constant 0 : i32
    %c0_i32_0 = arith.constant 0 : i32
    %c0_i32_1 = arith.constant 0 : i32
    return %c0_i32, %c0_i32_0 : i32, i32
  }
  func.func @transform_3(%arg0: i32, %arg1: i32) -> (i32, i32, i32) {
    %c0_i32 = arith.constant 0 : i32
    %c0_i32_0 = arith.constant 0 : i32
    %c0_i32_1 = arith.constant 0 : i32
    return %arg1, %c0_i32, %c0_i32_0 : i32, i32, i32
  }
  func.func @transform_4(%arg0: i32, %arg1: i32) -> (i32, i32, i32) {
    %c0_i32 = arith.constant 0 : i32
    %c0_i32_0 = arith.constant 0 : i32
    %c0_i32_1 = arith.constant 0 : i32
    return %arg1, %c0_i32, %c0_i32_0 : i32, i32, i32
  }
  func.func @transform_5(%arg0: i32, %arg1: i32) -> (i32, i32, i32) {
    %c0_i32 = arith.constant 0 : i32
    %c0_i32_0 = arith.constant 0 : i32
    %c0_i32_1 = arith.constant 0 : i32
    return %arg1, %c0_i32, %c0_i32_0 : i32, i32, i32
  }
  func.func @transform_6(%arg0: i32, %arg1: i32) -> (i32, i32, i32) {
    %c0_i32 = arith.constant 0 : i32
    %c0_i32_0 = arith.constant 0 : i32
    %c0_i32_1 = arith.constant 0 : i32
    return %arg1, %c0_i32, %c0_i32_0 : i32, i32, i32
  }
  func.func @transform_7(%arg0: i32, %arg1: i32) -> (i32, i32, i32) {
    %c0_i32 = arith.constant 0 : i32
    %c0_i32_0 = arith.constant 0 : i32
    %c0_i32_1 = arith.constant 0 : i32
    return %arg1, %c0_i32, %c0_i32_0 : i32, i32, i32
  }
  func.func @transform_8(%arg0: i32, %arg1: i32) -> (i32, i32, i32) {
    %c0_i32 = arith.constant 0 : i32
    %c0_i32_0 = arith.constant 0 : i32
    %c0_i32_1 = arith.constant 0 : i32
    return %arg1, %c0_i32, %c0_i32_0 : i32, i32, i32
  }
  func.func @transform_9(%arg0: i32, %arg1: i32) -> (i32, i32, i32) {
    %c0_i32 = arith.constant 0 : i32
    %c0_i32_0 = arith.constant 0 : i32
    %c0_i32_1 = arith.constant 0 : i32
    return %arg1, %c0_i32, %c0_i32_0 : i32, i32, i32
  }
  func.func @transform_10(%arg0: i32, %arg1: i32) -> (i32, i32, i32) {
    %c0_i32 = arith.constant 0 : i32
    %c0_i32_0 = arith.constant 0 : i32
    %c0_i32_1 = arith.constant 0 : i32
    return %arg1, %c0_i32, %c0_i32_0 : i32, i32, i32
  }
  func.func @transform_11(%arg0: i32, %arg1: i32) -> (i32, i32, i32) {
    %c0_i32 = arith.constant 0 : i32
    %c0_i32_0 = arith.constant 0 : i32
    %c0_i32_1 = arith.constant 0 : i32
    return %arg1, %c0_i32, %c0_i32_0 : i32, i32, i32
  }
  func.func @transform_12(%arg0: i32, %arg1: i32) -> (i32, i32, i32) {
    %c0_i32 = arith.constant 0 : i32
    %c0_i32_0 = arith.constant 0 : i32
    %c0_i32_1 = arith.constant 0 : i32
    return %arg1, %c0_i32, %c0_i32_0 : i32, i32, i32
  }
  func.func @transform_13(%arg0: i32, %arg1: i32) -> (i32, i32) {
    %c0_i32 = arith.constant 0 : i32
    %c0_i32_0 = arith.constant 0 : i32
    %c0_i32_1 = arith.constant 0 : i32
    return %c0_i32, %c0_i32_0 : i32, i32
  }
  func.func @transform_14(%arg0: i32, %arg1: i32) -> (i32, i32) {
    %c0_i32 = arith.constant 0 : i32
    %c0_i32_0 = arith.constant 0 : i32
    %c0_i32_1 = arith.constant 0 : i32
    return %c0_i32, %c0_i32_0 : i32, i32
  }
  func.func @transform_15(%arg0: i32, %arg1: i32) -> (i32, i32) {
    %c0_i32 = arith.constant 0 : i32
    %c0_i32_0 = arith.constant 0 : i32
    return %arg0, %c0_i32 : i32, i32
  }
}

</mosaic_0001>

<llo_original>
// kernel: tpu_custom_call.1
$region0: #{tpu_custom_call.1}
  #allocation0 [shape = 'u32[]', space=smem, size = 0x4, offset = 0x4, fixed_abs, tag = 'smem constant byte address 0x4 - core index']
  #allocation1 [shape = 'u32[144,128]{1,0:T(1,128)}', space=vmem, size = 0x12000, scoped, tag = 'internal scratch']
  #allocation2 [shape = 'f32[16,128]{1,0:T(8,128)}', space=vmem, size = 0x2000, scoped, tag = 'scratch operand']
  %s0 = inlined_call_operand.hbm [shape: f32[16,128], index: 0, kind: input, shape index: {}]
  %s1 = inlined_call_operand.hbm [shape: bf16[128,128], index: 1, kind: input, shape index: {}]
  %s2 = inlined_call_operand.hbm [shape: f32[1,128], index: 2, kind: input, shape index: {}]
  %s3 = inlined_call_operand.hbm [shape: bf16[3,128,128], index: 3, kind: input, shape index: {}]
  %s4 = inlined_call_operand.vmem [shape: f32[3,1,128], index: 4, kind: input, shape index: {}]
  %s5 = inlined_call_operand.hbm [shape: bf16[3,128,128], index: 5, kind: input, shape index: {}]
  %s6 = inlined_call_operand.vmem [shape: f32[3,1,128], index: 6, kind: input, shape index: {}]
  %s7 = inlined_call_operand.hbm [shape: bf16[3,128,128], index: 7, kind: input, shape index: {}]
  %s8 = inlined_call_operand.vmem [shape: f32[3,1,128], index: 8, kind: input, shape index: {}]
  %s9 = inlined_call_operand.vmem [shape: f32[3,1,128], index: 9, kind: input, shape index: {}]
  %s10 = inlined_call_operand.vmem [shape: f32[3,1,128], index: 10, kind: input, shape index: {}]
  %s11 = inlined_call_operand.vmem [shape: f32[3,1,128], index: 11, kind: input, shape index: {}]
  %s12 = inlined_call_operand.vmem [shape: f32[3,1,128], index: 12, kind: input, shape index: {}]
  %s13 = inlined_call_operand.hbm [shape: bf16[128,128], index: 13, kind: input, shape index: {}]
  %s14 = inlined_call_operand.vmem [shape: f32[1,128], index: 14, kind: input, shape index: {}]
  %s15 = inlined_call_operand.hbm [shape: f32[16,128], index: 15, kind: output, shape index: {}]
  %s16 = sld [smem:[#allocation0]]
  $region129: #{tpu_custom_call.1} parent=0
    _
  %s18 = ssub.s32 1, %s16
  %s19 = scalar_select 0, %s18, %s16
  $region1: #{tpu_custom_call.1} parent=0
    #allocation3 [shape = 'u8[8192]{0}', space=vmem, size = 0x2000, scoped, tag = 'input window, operand 0, single buffered']
    #allocation4 [shape = 's32[2]{0}', space=sflag, size = 0x8, scoped, tag = 'scoped memory for tpu_custom_call.1']
    #allocation5 [shape = 's32[2]{0}', space=sflag, size = 0x8, scoped, tag = 'scoped memory for tpu_custom_call.1']
    #allocation6 [shape = 'u8[32768]{0}', space=vmem, size = 0x8000, scoped, tag = 'input window, operand 1, single buffered']
    #allocation7 [shape = 's32[1]{0}', space=sflag, size = 0x4, scoped, tag = 'scoped memory for tpu_custom_call.1']
    #allocation8 [shape = 'u8[512]{0}', space=vmem, size = 0x400, scoped, tag = 'input window, operand 2, single buffered']
    #allocation9 [shape = 'u8[65536]{0}', space=vmem, size = 0x10000, scoped, tag = 'input window, operand 3']
    #allocation10 [shape = 's32[2]{0}', space=sflag, size = 0x8, scoped, tag = 'scoped memory for tpu_custom_call.1']
    #allocation11 [shape = 'u8[65536]{0}', space=vmem, size = 0x10000, scoped, tag = 'input window, operand 5']
    #allocation12 [shape = 'u8[65536]{0}', space=vmem, size = 0x10000, scoped, tag = 'input window, operand 7']
    #allocation13 [shape = 's32[2]{0}', space=sflag, size = 0x8, scoped, tag = 'scoped memory for tpu_custom_call.1']
    #allocation14 [shape = 'u8[32768]{0}', space=vmem, size = 0x8000, scoped, tag = 'input window, operand 13, single buffered']
    #allocation15 [shape = 'u8[8192]{0}', space=vmem, size = 0x2000, scoped, tag = 'output window, operand 0, single buffered']
    %20 = vsyncpa [#allocation4], 0
    %21 = vsyncpa [#allocation7], 0
    %22 = vsyncpa [#allocation10], 0
    %s23 = scalar_lea.sflag [#allocation10], 1
    %24 = vsyncpa %s23, 0
    %25 = vsyncpa [#allocation13], 0
    %s26 = scalar_lea.sflag [#allocation13], 1
    %27 = vsyncpa %s26, 0
    %28 = vsyncpa [#allocation5], 0
    loop: start=0, step=1, limit=5
    $region2: #{tpu_custom_call.1} parent=1 // loop_pre_header
      _
    $region3: #{tpu_custom_call.1} parent=1 // loop_header
      %s30 = sphi 0, %s34
      %p31 = scmp.ge.s32.totalorder %s30, 5
      %s37 = sphi 0, %s49
      %s38 = sphi 0, %s45
      %s39 = sphi 0, %s37
      %s40 = sphi 0, %s38
      %s41 = sphi 0, %s39
      %s42 = sphi 0, %s40
      %s52 = sphi 0, %s54
      %s55 = sphi 0, %s52
      %s56 = sphi 0, %s55
      %s72 = sphi 0, %s56
      %s76 = sphi 0, %s76
      %s78 = sphi 0, %s76
      %s79 = sphi 0, %s78
      %s93 = sphi 0, %s79
      %s97 = sphi 0, %s97
      %s99 = sphi 0, %s97
      %s100 = sphi 0, %s99
      %s114 = sphi 0, %s100
      %s120 = sphi 0, %s122
      %s123 = sphi 0, %s120
      %s124 = sphi 0, %s123
      %s140 = sphi 0, %s124
      %s146 = sphi 0, %s148
      %s149 = sphi 0, %s146
      %s150 = sphi 0, %s149
      %s166 = sphi 0, %s150
      %s172 = sphi 0, %s174
      %s175 = sphi 0, %s172
      %s176 = sphi 0, %s175
      %s192 = sphi 0, %s176
      %s198 = sphi 0, %s200
      %s201 = sphi 0, %s198
      %s202 = sphi 0, %s201
      %s218 = sphi 0, %s202
      %s224 = sphi 0, %s226
      %s227 = sphi 0, %s224
      %s228 = sphi 0, %s227
      %s244 = sphi 0, %s228
      %s250 = sphi 0, %s252
      %s253 = sphi 0, %s250
      %s254 = sphi 0, %s253
      %s270 = sphi 0, %s254
      %s276 = sphi 0, %s278
      %s279 = sphi 0, %s276
      %s280 = sphi 0, %s279
      %s296 = sphi 0, %s280
      %s302 = sphi 0, %s304
      %s305 = sphi 0, %s302
      %s306 = sphi 0, %s305
      %s322 = sphi 0, %s306
      %s328 = sphi 0, %s330
      %s331 = sphi 0, %s328
      %s332 = sphi 0, %s331
      %s348 = sphi 0, %s332
      %s354 = sphi 0, %s356
      %s357 = sphi 0, %s354
      %s358 = sphi 0, %s357
      %s374 = sphi 0, %s358
      %s378 = sphi 0, %s378
      %s380 = sphi 0, %s378
      %s381 = sphi 0, %s380
      %s395 = sphi 0, %s381
      %s399 = sphi 0, %s399
      %s401 = sphi 0, %s399
      %s402 = sphi 0, %s401
      %s416 = sphi 0, %s402
      %s422 = sphi 0, %s424
      %s425 = sphi 0, %s422
      %s426 = sphi 0, %s425
      %s442 = sphi 0, %s426
    $region4: #{tpu_custom_call.1} parent=1 // loop_header_branch
      %33 = sbr.rel (%p31) target = $region8
    $region5: #{tpu_custom_call.1} parent=1 // loop_body
      %s35 = ssub.s32 %s30, 1
      %s36 = ssub.s32 %s30, 2
      %s43 = sadd.s32 1, %s38
      %p44 = scmp.ge.s32.totalorder %s43, 3
      %s45 = scalar_select %p44, 0, %s43
      %s46 = sadd.s32 1, %s37
      %s47 = scalar_select %p44, %s46, %s37
      %p48 = scmp.ge.s32.totalorder %s47, 1
      %s49 = scalar_select %p48, 0, %s47
      %s50 = ssub.s32 %s37, %s49
      %p51 = scmp.eq.s32.totalorder %s50, 0
      %s53 = sadd.s32 %s52, 1
      %s54 = scalar_select %p51, %s52, %s53
      %p57 = pneg %p51
      %p58 = scmp.eq.s32.totalorder %s30, 2
      %p59 = por %p57, %p58
      %p60 = scmp.ne.s32.totalorder %s52, %s55
      %p61 = scmp.eq.s32.totalorder %s30, 0
      %p62 = por %p60, %p61
      %p63 = scmp.ne.s32.totalorder %s52, %s55
      %p64 = scmp.eq.s32.totalorder %s35, 2
      %p65 = por %p63, %p64
      %p66 = scmp.ne.s32.totalorder %s55, %s56
      %p67 = scmp.eq.s32.totalorder %s35, 0
      %p68 = por %p66, %p67
      %p69 = scmp.ne.s32.totalorder %s55, %s56
      %p70 = scmp.eq.s32.totalorder %s36, 2
      %p71 = por %p69, %p70
      %p73 = scmp.ne.s32.totalorder %s56, %s72
      %p74 = scmp.eq.s32.totalorder %s36, 0
      %p75 = por %p73, %p74
      %s77 = sadd.s32 %s76, 1
      %p80 = scmp.eq.s32.totalorder %s30, 2
      %p81 = scmp.ne.s32.totalorder %s76, %s78
      %p82 = scmp.eq.s32.totalorder %s30, 0
      %p83 = por %p81, %p82
      %p84 = scmp.ne.s32.totalorder %s76, %s78
      %p85 = scmp.eq.s32.totalorder %s35, 2
      %p86 = por %p84, %p85
      %p87 = scmp.ne.s32.totalorder %s78, %s79
      %p88 = scmp.eq.s32.totalorder %s35, 0
      %p89 = por %p87, %p88
      %p90 = scmp.ne.s32.totalorder %s78, %s79
      %p91 = scmp.eq.s32.totalorder %s36, 2
      %p92 = por %p90, %p91
      %p94 = scmp.ne.s32.totalorder %s79, %s93
      %p95 = scmp.eq.s32.totalorder %s36, 0
      %p96 = por %p94, %p95
      %s98 = sadd.s32 %s97, 1
      %p101 = scmp.eq.s32.totalorder %s30, 2
      %p102 = scmp.ne.s32.totalorder %s97, %s99
      %p103 = scmp.eq.s32.totalorder %s30, 0
      %p104 = por %p102, %p103
      %p105 = scmp.ne.s32.totalorder %s97, %s99
      %p106 = scmp.eq.s32.totalorder %s35, 2
      %p107 = por %p105, %p106
      %p108 = scmp.ne.s32.totalorder %s99, %s100
      %p109 = scmp.eq.s32.totalorder %s35, 0
      %p110 = por %p108, %p109
      %p111 = scmp.ne.s32.totalorder %s99, %s100
      %p112 = scmp.eq.s32.totalorder %s36, 2
      %p113 = por %p111, %p112
      %p115 = scmp.ne.s32.totalorder %s100, %s114
      %p116 = scmp.eq.s32.totalorder %s36, 0
      %p117 = por %p115, %p116
      %s118 = ssub.s32 %s38, %s45
      %p119 = scmp.eq.s32.totalorder %s118, 0
      %s121 = sadd.s32 %s120, 1
      %s122 = scalar_select %p119, %s120, %s121
      %p125 = pneg %p119
      %p126 = scmp.eq.s32.totalorder %s30, 2
      %p127 = por %p125, %p126
      %p128 = scmp.ne.s32.totalorder %s120, %s123
      %p129 = scmp.eq.s32.totalorder %s30, 0
      %p130 = por %p128, %p129
      %p131 = scmp.ne.s32.totalorder %s120, %s123
      %p132 = scmp.eq.s32.totalorder %s35, 2
      %p133 = por %p131, %p132
      %p134 = scmp.ne.s32.totalorder %s123, %s124
      %p135 = scmp.eq.s32.totalorder %s35, 0
      %p136 = por %p134, %p135
      %p137 = scmp.ne.s32.totalorder %s123, %s124
      %p138 = scmp.eq.s32.totalorder %s36, 2
      %p139 = por %p137, %p138
      %p141 = scmp.ne.s32.totalorder %s124, %s140
      %p142 = scmp.eq.s32.totalorder %s36, 0
      %p143 = por %p141, %p142
      %s144 = ssub.s32 %s38, %s45
      %p145 = scmp.eq.s32.totalorder %s144, 0
      %s147 = sadd.s32 %s146, 1
      %s148 = scalar_select %p145, %s146, %s147
      %p151 = pneg %p145
      %p152 = scmp.eq.s32.totalorder %s30, 2
      %p153 = por %p151, %p152
      %p154 = scmp.ne.s32.totalorder %s146, %s149
      %p155 = scmp.eq.s32.totalorder %s30, 0
      %p156 = por %p154, %p155
      %p157 = scmp.ne.s32.totalorder %s146, %s149
      %p158 = scmp.eq.s32.totalorder %s35, 2
      %p159 = por %p157, %p158
      %p160 = scmp.ne.s32.totalorder %s149, %s150
      %p161 = scmp.eq.s32.totalorder %s35, 0
      %p162 = por %p160, %p161
      %p163 = scmp.ne.s32.totalorder %s149, %s150
      %p164 = scmp.eq.s32.totalorder %s36, 2
      %p165 = por %p163, %p164
      %p167 = scmp.ne.s32.totalorder %s150, %s166
      %p168 = scmp.eq.s32.totalorder %s36, 0
      %p169 = por %p167, %p168
      %s170 = ssub.s32 %s38, %s45
      %p171 = scmp.eq.s32.totalorder %s170, 0
      %s173 = sadd.s32 %s172, 1
      %s174 = scalar_select %p171, %s172, %s173
      %p177 = pneg %p171
      %p178 = scmp.eq.s32.totalorder %s30, 2
      %p179 = por %p177, %p178
      %p180 = scmp.ne.s32.totalorder %s172, %s175
      %p181 = scmp.eq.s32.totalorder %s30, 0
      %p182 = por %p180, %p181
      %p183 = scmp.ne.s32.totalorder %s172, %s175
      %p184 = scmp.eq.s32.totalorder %s35, 2
      %p185 = por %p183, %p184
      %p186 = scmp.ne.s32.totalorder %s175, %s176
      %p187 = scmp.eq.s32.totalorder %s35, 0
      %p188 = por %p186, %p187
      %p189 = scmp.ne.s32.totalorder %s175, %s176
      %p190 = scmp.eq.s32.totalorder %s36, 2
      %p191 = por %p189, %p190
      %p193 = scmp.ne.s32.totalorder %s176, %s192
      %p194 = scmp.eq.s32.totalorder %s36, 0
      %p195 = por %p193, %p194
      %s196 = ssub.s32 %s38, %s45
      %p197 = scmp.eq.s32.totalorder %s196, 0
      %s199 = sadd.s32 %s198, 1
      %s200 = scalar_select %p197, %s198, %s199
      %p203 = pneg %p197
      %p204 = scmp.eq.s32.totalorder %s30, 2
      %p205 = por %p203, %p204
      %p206 = scmp.ne.s32.totalorder %s198, %s201
      %p207 = scmp.eq.s32.totalorder %s30, 0
      %p208 = por %p206, %p207
      %p209 = scmp.ne.s32.totalorder %s198, %s201
      %p210 = scmp.eq.s32.totalorder %s35, 2
      %p211 = por %p209, %p210
      %p212 = scmp.ne.s32.totalorder %s201, %s202
      %p213 = scmp.eq.s32.totalorder %s35, 0
      %p214 = por %p212, %p213
      %p215 = scmp.ne.s32.totalorder %s201, %s202
      %p216 = scmp.eq.s32.totalorder %s36, 2
      %p217 = por %p215, %p216
      %p219 = scmp.ne.s32.totalorder %s202, %s218
      %p220 = scmp.eq.s32.totalorder %s36, 0
      %p221 = por %p219, %p220
      %s222 = ssub.s32 %s38, %s45
      %p223 = scmp.eq.s32.totalorder %s222, 0
      %s225 = sadd.s32 %s224, 1
      %s226 = scalar_select %p223, %s224, %s225
      %p229 = pneg %p223
      %p230 = scmp.eq.s32.totalorder %s30, 2
      %p231 = por %p229, %p230
      %p232 = scmp.ne.s32.totalorder %s224, %s227
      %p233 = scmp.eq.s32.totalorder %s30, 0
      %p234 = por %p232, %p233
      %p235 = scmp.ne.s32.totalorder %s224, %s227
      %p236 = scmp.eq.s32.totalorder %s35, 2
      %p237 = por %p235, %p236
      %p238 = scmp.ne.s32.totalorder %s227, %s228
      %p239 = scmp.eq.s32.totalorder %s35, 0
      %p240 = por %p238, %p239
      %p241 = scmp.ne.s32.totalorder %s227, %s228
      %p242 = scmp.eq.s32.totalorder %s36, 2
      %p243 = por %p241, %p242
      %p245 = scmp.ne.s32.totalorder %s228, %s244
      %p246 = scmp.eq.s32.totalorder %s36, 0
      %p247 = por %p245, %p246
      %s248 = ssub.s32 %s38, %s45
      %p249 = scmp.eq.s32.totalorder %s248, 0
      %s251 = sadd.s32 %s250, 1
      %s252 = scalar_select %p249, %s250, %s251
      %p255 = pneg %p249
      %p256 = scmp.eq.s32.totalorder %s30, 2
      %p257 = por %p255, %p256
      %p258 = scmp.ne.s32.totalorder %s250, %s253
      %p259 = scmp.eq.s32.totalorder %s30, 0
      %p260 = por %p258, %p259
      %p261 = scmp.ne.s32.totalorder %s250, %s253
      %p262 = scmp.eq.s32.totalorder %s35, 2
      %p263 = por %p261, %p262
      %p264 = scmp.ne.s32.totalorder %s253, %s254
      %p265 = scmp.eq.s32.totalorder %s35, 0
      %p266 = por %p264, %p265
      %p267 = scmp.ne.s32.totalorder %s253, %s254
      %p268 = scmp.eq.s32.totalorder %s36, 2
      %p269 = por %p267, %p268
      %p271 = scmp.ne.s32.totalorder %s254, %s270
      %p272 = scmp.eq.s32.totalorder %s36, 0
      %p273 = por %p271, %p272
      %s274 = ssub.s32 %s38, %s45
      %p275 = scmp.eq.s32.totalorder %s274, 0
      %s277 = sadd.s32 %s276, 1
      %s278 = scalar_select %p275, %s276, %s277
      %p281 = pneg %p275
      %p282 = scmp.eq.s32.totalorder %s30, 2
      %p283 = por %p281, %p282
      %p284 = scmp.ne.s32.totalorder %s276, %s279
      %p285 = scmp.eq.s32.totalorder %s30, 0
      %p286 = por %p284, %p285
      %p287 = scmp.ne.s32.totalorder %s276, %s279
      %p288 = scmp.eq.s32.totalorder %s35, 2
      %p289 = por %p287, %p288
      %p290 = scmp.ne.s32.totalorder %s279, %s280
      %p291 = scmp.eq.s32.totalorder %s35, 0
      %p292 = por %p290, %p291
      %p293 = scmp.ne.s32.totalorder %s279, %s280
      %p294 = scmp.eq.s32.totalorder %s36, 2
      %p295 = por %p293, %p294
      %p297 = scmp.ne.s32.totalorder %s280, %s296
      %p298 = scmp.eq.s32.totalorder %s36, 0
      %p299 = por %p297, %p298
      %s300 = ssub.s32 %s38, %s45
      %p301 = scmp.eq.s32.totalorder %s300, 0
      %s303 = sadd.s32 %s302, 1
      %s304 = scalar_select %p301, %s302, %s303
      %p307 = pneg %p301
      %p308 = scmp.eq.s32.totalorder %s30, 2
      %p309 = por %p307, %p308
      %p310 = scmp.ne.s32.totalorder %s302, %s305
      %p311 = scmp.eq.s32.totalorder %s30, 0
      %p312 = por %p310, %p311
      %p313 = scmp.ne.s32.totalorder %s302, %s305
      %p314 = scmp.eq.s32.totalorder %s35, 2
      %p315 = por %p313, %p314
      %p316 = scmp.ne.s32.totalorder %s305, %s306
      %p317 = scmp.eq.s32.totalorder %s35, 0
      %p318 = por %p316, %p317
      %p319 = scmp.ne.s32.totalorder %s305, %s306
      %p320 = scmp.eq.s32.totalorder %s36, 2
      %p321 = por %p319, %p320
      %p323 = scmp.ne.s32.totalorder %s306, %s322
      %p324 = scmp.eq.s32.totalorder %s36, 0
      %p325 = por %p323, %p324
      %s326 = ssub.s32 %s38, %s45
      %p327 = scmp.eq.s32.totalorder %s326, 0
      %s329 = sadd.s32 %s328, 1
      %s330 = scalar_select %p327, %s328, %s329
      %p333 = pneg %p327
      %p334 = scmp.eq.s32.totalorder %s30, 2
      %p335 = por %p333, %p334
      %p336 = scmp.ne.s32.totalorder %s328, %s331
      %p337 = scmp.eq.s32.totalorder %s30, 0
      %p338 = por %p336, %p337
      %p339 = scmp.ne.s32.totalorder %s328, %s331
      %p340 = scmp.eq.s32.totalorder %s35, 2
      %p341 = por %p339, %p340
      %p342 = scmp.ne.s32.totalorder %s331, %s332
      %p343 = scmp.eq.s32.totalorder %s35, 0
      %p344 = por %p342, %p343
      %p345 = scmp.ne.s32.totalorder %s331, %s332
      %p346 = scmp.eq.s32.totalorder %s36, 2
      %p347 = por %p345, %p346
      %p349 = scmp.ne.s32.totalorder %s332, %s348
      %p350 = scmp.eq.s32.totalorder %s36, 0
      %p351 = por %p349, %p350
      %s352 = ssub.s32 %s38, %s45
      %p353 = scmp.eq.s32.totalorder %s352, 0
      %s355 = sadd.s32 %s354, 1
      %s356 = scalar_select %p353, %s354, %s355
      %p359 = pneg %p353
      %p360 = scmp.eq.s32.totalorder %s30, 2
      %p361 = por %p359, %p360
      %p362 = scmp.ne.s32.totalorder %s354, %s357
      %p363 = scmp.eq.s32.totalorder %s30, 0
      %p364 = por %p362, %p363
      %p365 = scmp.ne.s32.totalorder %s354, %s357
      %p366 = scmp.eq.s32.totalorder %s35, 2
      %p367 = por %p365, %p366
      %p368 = scmp.ne.s32.totalorder %s357, %s358
      %p369 = scmp.eq.s32.totalorder %s35, 0
      %p370 = por %p368, %p369
      %p371 = scmp.ne.s32.totalorder %s357, %s358
      %p372 = scmp.eq.s32.totalorder %s36, 2
      %p373 = por %p371, %p372
      %p375 = scmp.ne.s32.totalorder %s358, %s374
      %p376 = scmp.eq.s32.totalorder %s36, 0
      %p377 = por %p375, %p376
      %s379 = sadd.s32 %s378, 1
      %p382 = scmp.eq.s32.totalorder %s30, 2
      %p383 = scmp.ne.s32.totalorder %s378, %s380
      %p384 = scmp.eq.s32.totalorder %s30, 0
      %p385 = por %p383, %p384
      %p386 = scmp.ne.s32.totalorder %s378, %s380
      %p387 = scmp.eq.s32.totalorder %s35, 2
      %p388 = por %p386, %p387
      %p389 = scmp.ne.s32.totalorder %s380, %s381
      %p390 = scmp.eq.s32.totalorder %s35, 0
      %p391 = por %p389, %p390
      %p392 = scmp.ne.s32.totalorder %s380, %s381
      %p393 = scmp.eq.s32.totalorder %s36, 2
      %p394 = por %p392, %p393
      %p396 = scmp.ne.s32.totalorder %s381, %s395
      %p397 = scmp.eq.s32.totalorder %s36, 0
      %p398 = por %p396, %p397
      %s400 = sadd.s32 %s399, 1
      %p403 = scmp.eq.s32.totalorder %s30, 2
      %p404 = scmp.ne.s32.totalorder %s399, %s401
      %p405 = scmp.eq.s32.totalorder %s30, 0
      %p406 = por %p404, %p405
      %p407 = scmp.ne.s32.totalorder %s399, %s401
      %p408 = scmp.eq.s32.totalorder %s35, 2
      %p409 = por %p407, %p408
      %p410 = scmp.ne.s32.totalorder %s401, %s402
      %p411 = scmp.eq.s32.totalorder %s35, 0
      %p412 = por %p410, %p411
      %p413 = scmp.ne.s32.totalorder %s401, %s402
      %p414 = scmp.eq.s32.totalorder %s36, 2
      %p415 = por %p413, %p414
      %p417 = scmp.ne.s32.totalorder %s402, %s416
      %p418 = scmp.eq.s32.totalorder %s36, 0
      %p419 = por %p417, %p418
      %s420 = ssub.s32 %s37, %s49
      %p421 = scmp.eq.s32.totalorder %s420, 0
      %s423 = sadd.s32 %s422, 1
      %s424 = scalar_select %p421, %s422, %s423
      %p427 = pneg %p421
      %p428 = scmp.eq.s32.totalorder %s30, 2
      %p429 = por %p427, %p428
      %p430 = scmp.ne.s32.totalorder %s422, %s425
      %p431 = scmp.eq.s32.totalorder %s30, 0
      %p432 = por %p430, %p431
      %p433 = scmp.ne.s32.totalorder %s422, %s425
      %p434 = scmp.eq.s32.totalorder %s35, 2
      %p435 = por %p433, %p434
      %p436 = scmp.ne.s32.totalorder %s425, %s426
      %p437 = scmp.eq.s32.totalorder %s35, 0
      %p438 = por %p436, %p437
      %p439 = scmp.ne.s32.totalorder %s425, %s426
      %p440 = scmp.eq.s32.totalorder %s36, 2
      %p441 = por %p439, %p440
      %p443 = scmp.ne.s32.totalorder %s426, %s442
      %p444 = scmp.eq.s32.totalorder %s36, 0
      %p445 = por %p443, %p444
      %p446 = scmp.le.s32.totalorder 1, %s30
      %p447 = scmp.lt.s32.totalorder %s30, 4
      %p448 = pnand %p446, %p447
      %p449 = pneg %p448
      // Predicated region
      $region9: #{tpu_custom_call.1} parent=5 // pred_check
        _
      $region10: #{tpu_custom_call.1} parent=5 // pred_check_branch
        %451 = sbr.rel (%p448) target = $region12
      $region11: #{tpu_custom_call.1} parent=5 // pred_region
        %s452 = ssub.s32 %s30, 1
        // Predicated region
        $region13: #{tpu_custom_call.1} parent=11 // pred_check
          %p453 = pneg %p68
        $region14: #{tpu_custom_call.1} parent=11 // pred_check_branch
          %455 = sbr.rel (%p453) target = $region16
        $region15: #{tpu_custom_call.1} parent=11 // pred_region
          %s456 = smul.u32 2, %s39
          %s458 = ssub.s32 256, 256
          %459 = vsyncadd [#allocation4], %s458
          %s460 = smul.addr %s456, 128
          %s461 = scalar_lea.hbm %s0, %s460
          %s462 = sshll.u32 [#allocation3], 4
          %s463 = int_to_ptr.vmem [resolvable:$true] %s462
          %468 = dma.hbm_to_vmem [thread:$0]  %s461, 256, %s463, [#allocation4], 128, 128, 8
        $region16: #{tpu_custom_call.1} parent=11 // pred_fallthru
          _
        // Predicated region
        $region17: #{tpu_custom_call.1} parent=11 // pred_check
          %p469 = pneg %p89
        $region18: #{tpu_custom_call.1} parent=11 // pred_check_branch
          %471 = sbr.rel (%p469) target = $region20
        $region19: #{tpu_custom_call.1} parent=11 // pred_region
          %s473 = ssub.s32 1024, 1024
          %474 = vsyncadd [#allocation7], %s473
          %s475 = sshll.u32 [#allocation6], 4
          %s476 = int_to_ptr.vmem [resolvable:$true] %s475
          %481 = dma.hbm_to_vmem [thread:$0]  %s1, 1024, %s476, [#allocation7], 64, 64, 4
        $region20: #{tpu_custom_call.1} parent=11 // pred_fallthru
          _
        // Predicated region
        $region21: #{tpu_custom_call.1} parent=11 // pred_check
          %p482 = pneg %p110
        $region22: #{tpu_custom_call.1} parent=11 // pred_check_branch
          %484 = sbr.rel (%p482) target = $region24
        $region23: #{tpu_custom_call.1} parent=11 // pred_region
          %s486 = ssub.s32 16, 16
          %487 = vsyncadd [#allocation7], %s486
          %s489 = sshll.u32 [#allocation8], 4
          %s490 = int_to_ptr.vmem [resolvable:$true] %s489
          %492 = dma.hbm_to_vmem [thread:$0]  %s2, 16, %s490, [#allocation7]
        $region24: #{tpu_custom_call.1} parent=11 // pred_fallthru
          _
        // Predicated region
        $region25: #{tpu_custom_call.1} parent=11 // pred_check
          %p493 = pneg %p391
        $region26: #{tpu_custom_call.1} parent=11 // pred_check_branch
          %495 = sbr.rel (%p493) target = $region28
        $region27: #{tpu_custom_call.1} parent=11 // pred_region
          %s497 = ssub.s32 1024, 1024
          %498 = vsyncadd [#allocation13], %s497
          %s499 = sshll.u32 [#allocation14], 4
          %s500 = int_to_ptr.vmem [resolvable:$true] %s499
          %505 = dma.hbm_to_vmem [thread:$0]  %s13, 1024, %s500, [#allocation13], 64, 64, 4
        $region28: #{tpu_custom_call.1} parent=11 // pred_fallthru
          _
        // Predicated region
        $region29: #{tpu_custom_call.1} parent=11 // pred_check
          %p506 = pneg %p412
        $region30: #{tpu_custom_call.1} parent=11 // pred_check_branch
          %508 = sbr.rel (%p506) target = $region32
        $region31: #{tpu_custom_call.1} parent=11 // pred_region
          _
        $region32: #{tpu_custom_call.1} parent=11 // pred_fallthru
          _
      $region12: #{tpu_custom_call.1} parent=5 // pred_fallthru
        _
      %p509 = scmp.lt.s32.totalorder %s30, 3
      // Predicated region
      $region33: #{tpu_custom_call.1} parent=5 // pred_check
        %p510 = pneg %p509
      $region34: #{tpu_custom_call.1} parent=5 // pred_check_branch
        %512 = sbr.rel (%p510) target = $region36
      $region35: #{tpu_custom_call.1} parent=5 // pred_region
        // Predicated region
        $region37: #{tpu_custom_call.1} parent=35 // pred_check
          %p513 = pneg %p130
        $region38: #{tpu_custom_call.1} parent=35 // pred_check_branch
          %515 = sbr.rel (%p513) target = $region40
        $region39: #{tpu_custom_call.1} parent=35 // pred_region
          %s516 = sand.u32 %s30, 1
          %s517 = scalar_lea.sflag [#allocation10], %s516
          %s518 = sand.u32 %s120, 1
          %s519 = smul.addr %s518, 64
          %s520 = scalar_lea.vmem [#allocation9], %s519
          %s522 = ssub.s32 1024, 1024
          %523 = vsyncadd %s517, %s522
          %s524 = smul.addr %s38, 16
          %s525 = smul.addr %s524, 64
          %s526 = scalar_lea.hbm %s3, %s525
          %s527 = sshll.u32 %s520, 4
          %s528 = int_to_ptr.vmem [resolvable:$true] %s527
          %533 = dma.hbm_to_vmem [thread:$0]  %s526, 1024, %s528, %s517, 64, 64, 4
        $region40: #{tpu_custom_call.1} parent=35 // pred_fallthru
          _
        // Predicated region
        $region41: #{tpu_custom_call.1} parent=35 // pred_check
          %p534 = pneg %p156
        $region42: #{tpu_custom_call.1} parent=35 // pred_check_branch
          %536 = sbr.rel (%p534) target = $region44
        $region43: #{tpu_custom_call.1} parent=35 // pred_region
          %p537 = scmp.lt.s32.totalorder %s38, 2
          %s538 = scalar_select %p537, %s38, 2
          %s539 = scalar_lea.vmem %s4, %s538
        $region44: #{tpu_custom_call.1} parent=35 // pred_fallthru
          _
        // Predicated region
        $region45: #{tpu_custom_call.1} parent=35 // pred_check
          %p540 = pneg %p182
        $region46: #{tpu_custom_call.1} parent=35 // pred_check_branch
          %542 = sbr.rel (%p540) target = $region48
        $region47: #{tpu_custom_call.1} parent=35 // pred_region
          %s543 = sand.u32 %s30, 1
          %s544 = scalar_lea.sflag [#allocation10], %s543
          %s545 = sand.u32 %s172, 1
          %s546 = smul.addr %s545, 64
          %s547 = scalar_lea.vmem [#allocation11], %s546
          %s549 = ssub.s32 1024, 1024
          %550 = vsyncadd %s544, %s549
          %s551 = smul.addr %s38, 16
          %s552 = smul.addr %s551, 64
          %s553 = scalar_lea.hbm %s5, %s552
          %s554 = sshll.u32 %s547, 4
          %s555 = int_to_ptr.vmem [resolvable:$true] %s554
          %560 = dma.hbm_to_vmem [thread:$0]  %s553, 1024, %s555, %s544, 64, 64, 4
        $region48: #{tpu_custom_call.1} parent=35 // pred_fallthru
          _
        // Predicated region
        $region49: #{tpu_custom_call.1} parent=35 // pred_check
          %p561 = pneg %p208
        $region50: #{tpu_custom_call.1} parent=35 // pred_check_branch
          %563 = sbr.rel (%p561) target = $region52
        $region51: #{tpu_custom_call.1} parent=35 // pred_region
          %p564 = scmp.lt.s32.totalorder %s38, 2
          %s565 = scalar_select %p564, %s38, 2
          %s566 = scalar_lea.vmem %s6, %s565
        $region52: #{tpu_custom_call.1} parent=35 // pred_fallthru
          _
        // Predicated region
        $region53: #{tpu_custom_call.1} parent=35 // pred_check
          %p567 = pneg %p234
        $region54: #{tpu_custom_call.1} parent=35 // pred_check_branch
          %569 = sbr.rel (%p567) target = $region56
        $region55: #{tpu_custom_call.1} parent=35 // pred_region
          %s570 = sand.u32 %s30, 1
          %s571 = scalar_lea.sflag [#allocation13], %s570
          %s572 = sand.u32 %s224, 1
          %s573 = smul.addr %s572, 64
          %s574 = scalar_lea.vmem [#allocation12], %s573
          %s576 = ssub.s32 1024, 1024
          %577 = vsyncadd %s571, %s576
          %s578 = smul.addr %s38, 16
          %s579 = smul.addr %s578, 64
          %s580 = scalar_lea.hbm %s7, %s579
          %s581 = sshll.u32 %s574, 4
          %s582 = int_to_ptr.vmem [resolvable:$true] %s581
          %587 = dma.hbm_to_vmem [thread:$0]  %s580, 1024, %s582, %s571, 64, 64, 4
        $region56: #{tpu_custom_call.1} parent=35 // pred_fallthru
          _
        // Predicated region
        $region57: #{tpu_custom_call.1} parent=35 // pred_check
          %p588 = pneg %p260
        $region58: #{tpu_custom_call.1} parent=35 // pred_check_branch
          %590 = sbr.rel (%p588) target = $region60
        $region59: #{tpu_custom_call.1} parent=35 // pred_region
          %p591 = scmp.lt.s32.totalorder %s38, 2
          %s592 = scalar_select %p591, %s38, 2
          %s593 = scalar_lea.vmem %s8, %s592
        $region60: #{tpu_custom_call.1} parent=35 // pred_fallthru
          _
        // Predicated region
        $region61: #{tpu_custom_call.1} parent=35 // pred_check
          %p594 = pneg %p286
        $region62: #{tpu_custom_call.1} parent=35 // pred_check_branch
          %596 = sbr.rel (%p594) target = $region64
        $region63: #{tpu_custom_call.1} parent=35 // pred_region
          %p597 = scmp.lt.s32.totalorder %s38, 2
          %s598 = scalar_select %p597, %s38, 2
          %s599 = scalar_lea.vmem %s9, %s598
        $region64: #{tpu_custom_call.1} parent=35 // pred_fallthru
          _
        // Predicated region
        $region65: #{tpu_custom_call.1} parent=35 // pred_check
          %p600 = pneg %p312
        $region66: #{tpu_custom_call.1} parent=35 // pred_check_branch
          %602 = sbr.rel (%p600) target = $region68
        $region67: #{tpu_custom_call.1} parent=35 // pred_region
          %p603 = scmp.lt.s32.totalorder %s38, 2
          %s604 = scalar_select %p603, %s38, 2
          %s605 = scalar_lea.vmem %s10, %s604
        $region68: #{tpu_custom_call.1} parent=35 // pred_fallthru
          _
        // Predicated region
        $region69: #{tpu_custom_call.1} parent=35 // pred_check
          %p606 = pneg %p338
        $region70: #{tpu_custom_call.1} parent=35 // pred_check_branch
          %608 = sbr.rel (%p606) target = $region72
        $region71: #{tpu_custom_call.1} parent=35 // pred_region
          %p609 = scmp.lt.s32.totalorder %s38, 2
          %s610 = scalar_select %p609, %s38, 2
          %s611 = scalar_lea.vmem %s11, %s610
        $region72: #{tpu_custom_call.1} parent=35 // pred_fallthru
          _
        // Predicated region
        $region73: #{tpu_custom_call.1} parent=35 // pred_check
          %p612 = pneg %p364
        $region74: #{tpu_custom_call.1} parent=35 // pred_check_branch
          %614 = sbr.rel (%p612) target = $region76
        $region75: #{tpu_custom_call.1} parent=35 // pred_region
          %p615 = scmp.lt.s32.totalorder %s38, 2
          %s616 = scalar_select %p615, %s38, 2
          %s617 = scalar_lea.vmem %s12, %s616
        $region76: #{tpu_custom_call.1} parent=35 // pred_fallthru
          _
      $region36: #{tpu_custom_call.1} parent=5 // pred_fallthru
        _
      %p618 = scmp.le.s32.totalorder 1, %s30
      %p619 = scmp.lt.s32.totalorder %s30, 4
      %p620 = pnand %p618, %p619
      %p621 = pneg %p620
      // Predicated region
      $region77: #{tpu_custom_call.1} parent=5 // pred_check
        _
      $region78: #{tpu_custom_call.1} parent=5 // pred_check_branch
        %623 = sbr.rel (%p620) target = $region80
      $region79: #{tpu_custom_call.1} parent=5 // pred_region
        %s624 = ssub.s32 %s30, 1
        // Predicated region
        $region81: #{tpu_custom_call.1} parent=79 // pred_check
          %p625 = pneg %p68
        $region82: #{tpu_custom_call.1} parent=79 // pred_check_branch
          %627 = sbr.rel (%p625) target = $region84
        $region83: #{tpu_custom_call.1} parent=79 // pred_region
          %628 = dma.done [#allocation4], 256
        $region84: #{tpu_custom_call.1} parent=79 // pred_fallthru
          _
        // Predicated region
        $region85: #{tpu_custom_call.1} parent=79 // pred_check
          %p629 = pneg %p89
        $region86: #{tpu_custom_call.1} parent=79 // pred_check_branch
          %631 = sbr.rel (%p629) target = $region88
        $region87: #{tpu_custom_call.1} parent=79 // pred_region
          %632 = dma.done [#allocation7], 1024
        $region88: #{tpu_custom_call.1} parent=79 // pred_fallthru
          _
        // Predicated region
        $region89: #{tpu_custom_call.1} parent=79 // pred_check
          %p633 = pneg %p110
        $region90: #{tpu_custom_call.1} parent=79 // pred_check_branch
          %635 = sbr.rel (%p633) target = $region92
        $region91: #{tpu_custom_call.1} parent=79 // pred_region
          %636 = dma.done [#allocation7], 16
        $region92: #{tpu_custom_call.1} parent=79 // pred_fallthru
          _
        %s637 = sand.u32 %s35, 1
        %s638 = scalar_lea.sflag [#allocation10], %s637
        %s639 = sand.u32 %s123, 1
        %s640 = smul.addr %s639, 64
        %s641 = scalar_lea.vmem [#allocation9], %s640
        // Predicated region
        $region93: #{tpu_custom_call.1} parent=79 // pred_check
          %p642 = pneg %p136
        $region94: #{tpu_custom_call.1} parent=79 // pred_check_branch
          %644 = sbr.rel (%p642) target = $region96
        $region95: #{tpu_custom_call.1} parent=79 // pred_region
          %645 = dma.done %s638, 1024
        $region96: #{tpu_custom_call.1} parent=79 // pred_fallthru
          _
        %s646 = sand.u32 %s35, 1
        %s647 = scalar_lea.sflag [#allocation10], %s646
        %s648 = sand.u32 %s175, 1
        %s649 = smul.addr %s648, 64
        %s650 = scalar_lea.vmem [#allocation11], %s649
        // Predicated region
        $region97: #{tpu_custom_call.1} parent=79 // pred_check
          %p651 = pneg %p188
        $region98: #{tpu_custom_call.1} parent=79 // pred_check_branch
          %653 = sbr.rel (%p651) target = $region100
        $region99: #{tpu_custom_call.1} parent=79 // pred_region
          %654 = dma.done %s647, 1024
        $region100: #{tpu_custom_call.1} parent=79 // pred_fallthru
          _
        %s655 = sand.u32 %s35, 1
        %s656 = scalar_lea.sflag [#allocation13], %s655
        %s657 = sand.u32 %s227, 1
        %s658 = smul.addr %s657, 64
        %s659 = scalar_lea.vmem [#allocation12], %s658
        // Predicated region
        $region101: #{tpu_custom_call.1} parent=79 // pred_check
          %p660 = pneg %p240
        $region102: #{tpu_custom_call.1} parent=79 // pred_check_branch
          %662 = sbr.rel (%p660) target = $region104
        $region103: #{tpu_custom_call.1} parent=79 // pred_region
          %663 = dma.done %s656, 1024
        $region104: #{tpu_custom_call.1} parent=79 // pred_fallthru
          _
        // Predicated region
        $region105: #{tpu_custom_call.1} parent=79 // pred_check
          %p664 = pneg %p391
        $region106: #{tpu_custom_call.1} parent=79 // pred_check_branch
          %666 = sbr.rel (%p664) target = $region108
        $region107: #{tpu_custom_call.1} parent=79 // pred_region
          %667 = dma.done [#allocation13], 1024
        $region108: #{tpu_custom_call.1} parent=79 // pred_fallthru
          _
        %p668 = pneg %p68
        %p669 = pneg %p65
        %p670 = pneg %p89
        %p671 = pneg %p86
        %p672 = pneg %p110
        %p673 = pneg %p107
        %s674 = sand.u32 %s35, 1
        %s675 = scalar_lea.sflag [#allocation10], %s674
        %s676 = sand.u32 %s123, 1
        %s677 = smul.addr %s676, 64
        %s678 = scalar_lea.vmem [#allocation9], %s677
        %p679 = pneg %p136
        %p680 = pneg %p133
        %p681 = scmp.lt.s32.totalorder %s40, 2
        %s682 = scalar_select %p681, %s40, 2
        %s683 = scalar_lea.vmem %s4, %s682
        %p684 = pneg %p162
        %p685 = pneg %p159
        %s686 = sand.u32 %s35, 1
        %s687 = scalar_lea.sflag [#allocation10], %s686
        %s688 = sand.u32 %s175, 1
        %s689 = smul.addr %s688, 64
        %s690 = scalar_lea.vmem [#allocation11], %s689
        %p691 = pneg %p188
        %p692 = pneg %p185
        %p693 = scmp.lt.s32.totalorder %s40, 2
        %s694 = scalar_select %p693, %s40, 2
        %s695 = scalar_lea.vmem %s6, %s694
        %p696 = pneg %p214
        %p697 = pneg %p211
        %s698 = sand.u32 %s35, 1
        %s699 = scalar_lea.sflag [#allocation13], %s698
        %s700 = sand.u32 %s227, 1
        %s701 = smul.addr %s700, 64
        %s702 = scalar_lea.vmem [#allocation12], %s701
        %p703 = pneg %p240
        %p704 = pneg %p237
        %p705 = scmp.lt.s32.totalorder %s40, 2
        %s706 = scalar_select %p705, %s40, 2
        %s707 = scalar_lea.vmem %s8, %s706
        %p708 = pneg %p266
        %p709 = pneg %p263
        %p710 = scmp.lt.s32.totalorder %s40, 2
        %s711 = scalar_select %p710, %s40, 2
        %s712 = scalar_lea.vmem %s9, %s711
        %p713 = pneg %p292
        %p714 = pneg %p289
        %p715 = scmp.lt.s32.totalorder %s40, 2
        %s716 = scalar_select %p715, %s40, 2
        %s717 = scalar_lea.vmem %s10, %s716
        %p718 = pneg %p318
        %p719 = pneg %p315
        %p720 = scmp.lt.s32.totalorder %s40, 2
        %s721 = scalar_select %p720, %s40, 2
        %s722 = scalar_lea.vmem %s11, %s721
        %p723 = pneg %p344
        %p724 = pneg %p341
        %p725 = scmp.lt.s32.totalorder %s40, 2
        %s726 = scalar_select %p725, %s40, 2
        %s727 = scalar_lea.vmem %s12, %s726
        %p728 = pneg %p370
        %p729 = pneg %p367
        %p730 = pneg %p391
        %p731 = pneg %p388
        %p732 = pneg %p412
        %p733 = pneg %p409
        %p734 = pneg %p438
        %p735 = pneg %p435
        %s736 = smul.u32 2, %s39
        %p737 = scmp.lt.s32.totalorder %s40, 2
        %s738 = scalar_select %p737, %s40, 2
        %s739 = scalar_lea.vmem %s4, %s738
        %p740 = scmp.lt.s32.totalorder %s40, 2
        %s741 = scalar_select %p740, %s40, 2
        %s742 = scalar_lea.vmem %s6, %s741
        %p743 = scmp.lt.s32.totalorder %s40, 2
        %s744 = scalar_select %p743, %s40, 2
        %s745 = scalar_lea.vmem %s8, %s744
        %p746 = scmp.lt.s32.totalorder %s40, 2
        %s747 = scalar_select %p746, %s40, 2
        %s748 = scalar_lea.vmem %s9, %s747
        %p749 = scmp.lt.s32.totalorder %s40, 2
        %s750 = scalar_select %p749, %s40, 2
        %s751 = scalar_lea.vmem %s10, %s750
        %p752 = scmp.lt.s32.totalorder %s40, 2
        %s753 = scalar_select %p752, %s40, 2
        %s754 = scalar_lea.vmem %s11, %s753
        %p755 = scmp.lt.s32.totalorder %s40, 2
        %s756 = scalar_select %p755, %s40, 2
        %s757 = scalar_lea.vmem %s12, %s756
        %s758 = smul.u32 2, %s39
        %p760 = scmp.eq.s32.totalorder %s40, 0
        // Predicated region
        $region109: #{tpu_custom_call.1} parent=79 // pred_check
          %p761 = pneg %p760
        $region110: #{tpu_custom_call.1} parent=79 // pred_check_branch
          %763 = sbr.rel (%p761) target = $region112
        $region111: #{tpu_custom_call.1} parent=79 // pred_region
          %v764 = vld [vmem:[#allocation3] sm:$0xff]
          %v765 = vld [vmem:[#allocation3 + $0x8] sm:$0xff]
          %v766 = vpack.c.bf16 %v765, %v764
          %v767 = vld [vmem:[#allocation6] sm:$0xf]
          %v768 = vld [vmem:[#allocation6 + $0x4] sm:$0xf]
          %v769 = vld [vmem:[#allocation6 + $0x8] sm:$0xf]
          %v770 = vld [vmem:[#allocation6 + $0xc] sm:$0xf]
          %v771 = vld [vmem:[#allocation6 + $0x10] sm:$0xf]
          %v772 = vld [vmem:[#allocation6 + $0x14] sm:$0xf]
          %v773 = vld [vmem:[#allocation6 + $0x18] sm:$0xf]
          %v774 = vld [vmem:[#allocation6 + $0x1c] sm:$0xf]
          %v775 = vld [vmem:[#allocation6 + $0x20] sm:$0xf]
          %v776 = vld [vmem:[#allocation6 + $0x24] sm:$0xf]
          %v777 = vld [vmem:[#allocation6 + $0x28] sm:$0xf]
          %v778 = vld [vmem:[#allocation6 + $0x2c] sm:$0xf]
          %v779 = vld [vmem:[#allocation6 + $0x30] sm:$0xf]
          %v780 = vld [vmem:[#allocation6 + $0x34] sm:$0xf]
          %v781 = vld [vmem:[#allocation6 + $0x38] sm:$0xf]
          %v782 = vld [vmem:[#allocation6 + $0x3c] sm:$0xf]
          %v783 = vld [vmem:[#allocation8] sm:$0x1]
          %v785 = vlaneseq
          %v786 = vshrl.u32 %v785, 7
          %v787 = vsub.s32 0, %v786
          %v788 = vrot.slane %v783, %v787
          %v806 = vunpack.c.l.b16 %v767
          %v807 = vunpack.c.l.b16 %v768
          %v808 = vunpack.c.l.b16 %v769
          %v809 = vunpack.c.l.b16 %v770
          %v810 = vunpack.c.l.b16 %v771
          %v811 = vunpack.c.l.b16 %v772
          %v812 = vunpack.c.l.b16 %v773
          %v813 = vunpack.c.l.b16 %v774
          %v814 = vunpack.c.l.b16 %v775
          %v815 = vunpack.c.l.b16 %v776
          %v816 = vunpack.c.l.b16 %v777
          %v817 = vunpack.c.l.b16 %v778
          %v818 = vunpack.c.l.b16 %v779
          %v819 = vunpack.c.l.b16 %v780
          %v820 = vunpack.c.l.b16 %v781
          %v821 = vunpack.c.l.b16 %v782
          %v822 = vpack.c.b16 %v807, %v806
          %v823 = vpack.c.b16 %v809, %v808
          %v824 = vpack.c.b16 %v811, %v810
          %v825 = vpack.c.b16 %v813, %v812
          %v826 = vpack.c.b16 %v815, %v814
          %v827 = vpack.c.b16 %v817, %v816
          %v828 = vpack.c.b16 %v819, %v818
          %v829 = vpack.c.b16 %v821, %v820
          %838 = vmatprep.subr.bf16.mxu0 0
          %839 = vmatpush1.bf16.msra.mxu0 %v829
          %840 = vmatprep.subr.bf16.mxu0 0
          %841 = vmatpush1.bf16.msra.mxu0 %v828
          %842 = vmatprep.subr.bf16.mxu0 0
          %843 = vmatpush1.bf16.msra.mxu0 %v827
          %844 = vmatprep.subr.bf16.mxu0 0
          %845 = vmatpush1.bf16.msra.mxu0 %v826
          %846 = vmatprep.subr.bf16.mxu0 0
          %847 = vmatpush1.bf16.msra.mxu0 %v825
          %848 = vmatprep.subr.bf16.mxu0 0
          %849 = vmatpush1.bf16.msra.mxu0 %v824
          %850 = vmatprep.subr.bf16.mxu0 0
          %851 = vmatpush1.bf16.msra.mxu0 %v823
          %852 = vmatprep.subr.bf16.mxu0 0
          %853 = vmatpush1.bf16.msra.mxu0 %v822
          %854 = vmatprep.subr.bf16.mxu0 0
          %855 = vmatpush2.bf16.msra.mxu0 0
          %856 = vmatprep.subr.bf16.mxu0 0
          %857 = vmatpush2.bf16.msra.mxu0 0
          %858 = vmatprep.subr.bf16.mxu0 0
          %859 = vmatpush2.bf16.msra.mxu0 0
          %860 = vmatprep.subr.bf16.mxu0 0
          %861 = vmatpush2.bf16.msra.mxu0 0
          %862 = vmatprep.subr.bf16.mxu0 0
          %863 = vmatpush2.bf16.msra.mxu0 0
          %864 = vmatprep.subr.bf16.mxu0 0
          %865 = vmatpush2.bf16.msra.mxu0 0
          %866 = vmatprep.subr.bf16.mxu0 0
          %867 = vmatpush2.bf16.msra.mxu0 0
          %868 = vmatprep.subr.bf16.mxu0 0
          %869 = vmatpush2.bf16.msra.mxu0 0
          %870 = vmatprep.mubr.bf16.mxu0 0
          %871 = vmatmul.mubr.bf16.gmra.mxu0 %v766
          %v872 = vpop.f32.mrf.mxu0
          %v873 = vadd.f32 %v788, %v872
          %v874 = vpop.f32.mrf.mxu0
          %v875 = vpop.f32.mrf.mxu0
          %v876 = vadd.f32 %v788, %v875
          %v877 = vpop.f32.mrf.mxu0
          %878 = vdwg.mxu0
          %879 = vst [vmem:[#allocation2] sm:$0xff] %v873
          %880 = vst [vmem:[#allocation2 + $0x8] sm:$0xff] %v876
        $region112: #{tpu_custom_call.1} parent=79 // pred_fallthru
          _
        %v881 = vld [vmem:[#allocation2] sm:$0xff]
        %v882 = vld [vmem:[#allocation2 + $0x8] sm:$0xff]
        %v883 = vlaneseq
        %v884 = vand.u32 %v883, 127
        %vm885 = vcmp.lt.s32.totalorder %v884, 32
        %v886 = vpack.c.bf16 %v882, %v881
        %v887 = vld [vmem:[%s641] sm:$0xf]
        %v888 = vld [vmem:[%s641 + $0x4] sm:$0xf]
        %v889 = vld [vmem:[%s641 + $0x8] sm:$0xf]
        %v890 = vld [vmem:[%s641 + $0xc] sm:$0xf]
        %v891 = vld [vmem:[%s641 + $0x10] sm:$0xf]
        %v892 = vld [vmem:[%s641 + $0x14] sm:$0xf]
        %v893 = vld [vmem:[%s641 + $0x18] sm:$0xf]
        %v894 = vld [vmem:[%s641 + $0x1c] sm:$0xf]
        %v895 = vld [vmem:[%s641 + $0x20] sm:$0xf]
        %v896 = vld [vmem:[%s641 + $0x24] sm:$0xf]
        %v897 = vld [vmem:[%s641 + $0x28] sm:$0xf]
        %v898 = vld [vmem:[%s641 + $0x2c] sm:$0xf]
        %v899 = vld [vmem:[%s641 + $0x30] sm:$0xf]
        %v900 = vld [vmem:[%s641 + $0x34] sm:$0xf]
        %v901 = vld [vmem:[%s641 + $0x38] sm:$0xf]
        %v902 = vld [vmem:[%s641 + $0x3c] sm:$0xf]
        %v903 = vld [vmem:[%s739] sm:$0x1]
        %v905 = vlaneseq
        %v906 = vshrl.u32 %v905, 7
        %v907 = vsub.s32 0, %v906
        %v908 = vrot.slane %v903, %v907
        %v926 = vunpack.c.l.b16 %v887
        %v927 = vunpack.c.l.b16 %v888
        %v928 = vunpack.c.l.b16 %v889
        %v929 = vunpack.c.l.b16 %v890
        %v930 = vunpack.c.l.b16 %v891
        %v931 = vunpack.c.l.b16 %v892
        %v932 = vunpack.c.l.b16 %v893
        %v933 = vunpack.c.l.b16 %v894
        %v934 = vunpack.c.l.b16 %v895
        %v935 = vunpack.c.l.b16 %v896
        %v936 = vunpack.c.l.b16 %v897
        %v937 = vunpack.c.l.b16 %v898
        %v938 = vunpack.c.l.b16 %v899
        %v939 = vunpack.c.l.b16 %v900
        %v940 = vunpack.c.l.b16 %v901
        %v941 = vunpack.c.l.b16 %v902
        %v942 = vpack.c.b16 %v927, %v926
        %v943 = vpack.c.b16 %v929, %v928
        %v944 = vpack.c.b16 %v931, %v930
        %v945 = vpack.c.b16 %v933, %v932
        %v946 = vpack.c.b16 %v935, %v934
        %v947 = vpack.c.b16 %v937, %v936
        %v948 = vpack.c.b16 %v939, %v938
        %v949 = vpack.c.b16 %v941, %v940
        %958 = vmatprep.subr.bf16.mxu0 0
        %959 = vmatpush1.bf16.msra.mxu0 %v949
        %960 = vmatprep.subr.bf16.mxu0 0
        %961 = vmatpush1.bf16.msra.mxu0 %v948
        %962 = vmatprep.subr.bf16.mxu0 0
        %963 = vmatpush1.bf16.msra.mxu0 %v947
        %964 = vmatprep.subr.bf16.mxu0 0
        %965 = vmatpush1.bf16.msra.mxu0 %v946
        %966 = vmatprep.subr.bf16.mxu0 0
        %967 = vmatpush1.bf16.msra.mxu0 %v945
        %968 = vmatprep.subr.bf16.mxu0 0
        %969 = vmatpush1.bf16.msra.mxu0 %v944
        %970 = vmatprep.subr.bf16.mxu0 0
        %971 = vmatpush1.bf16.msra.mxu0 %v943
        %972 = vmatprep.subr.bf16.mxu0 0
        %973 = vmatpush1.bf16.msra.mxu0 %v942
        %974 = vmatprep.subr.bf16.mxu0 0
        %975 = vmatpush2.bf16.msra.mxu0 0
        %976 = vmatprep.subr.bf16.mxu0 0
        %977 = vmatpush2.bf16.msra.mxu0 0
        %978 = vmatprep.subr.bf16.mxu0 0
        %979 = vmatpush2.bf16.msra.mxu0 0
        %980 = vmatprep.subr.bf16.mxu0 0
        %981 = vmatpush2.bf16.msra.mxu0 0
        %982 = vmatprep.subr.bf16.mxu0 0
        %983 = vmatpush2.bf16.msra.mxu0 0
        %984 = vmatprep.subr.bf16.mxu0 0
        %985 = vmatpush2.bf16.msra.mxu0 0
        %986 = vmatprep.subr.bf16.mxu0 0
        %987 = vmatpush2.bf16.msra.mxu0 0
        %988 = vmatprep.subr.bf16.mxu0 0
        %989 = vmatpush2.bf16.msra.mxu0 0
        %990 = vmatprep.mubr.bf16.mxu0 0
        %991 = vmatmul.mubr.bf16.gmra.mxu0 %v886
        %v992 = vpop.f32.mrf.mxu0
        %v993 = vadd.f32 %v908, %v992
        %v994 = vpop.f32.mrf.mxu0
        %v995 = vpop.f32.mrf.mxu0
        %v996 = vadd.f32 %v908, %v995
        %v997 = vpop.f32.mrf.mxu0
        %998 = vdwg.mxu0
        %v999 = vld [vmem:[%s748] sm:$0x1]
        %v1000 = vld [vmem:[%s751] sm:$0x1]
        %v1001 = vadd.f32 %v881, %v993
        %v1002 = vadd.f32 %v882, %v996
        %1003 = vadd.xlane.f32.xlu0 %v1001
        %v1004 = vpop.xlane.xlu0 %1003
        %1005 = vadd.xlane.f32.xlu0 %v1002
        %v1006 = vpop.xlane.xlu0 %1005
        %v1007 = vmul.f32 %v1004, 0.03125
        %v1008 = vmul.f32 %v1006, 0.03125
        %v1009 = vsub.f32 %v1001, %v1007
        %v1010 = vsub.f32 %v1002, %v1008
        %v1011 = vsel %vm885, %v1009, 0.0
        %v1012 = vsel %vm885, %v1010, 0.0
        %v1013 = vmul.f32 %v1011, %v1011
        %v1014 = vmul.f32 %v1012, %v1012
        %1015 = vadd.xlane.f32.xlu0 %v1013
        %v1016 = vpop.xlane.xlu0 %1015
        %1017 = vadd.xlane.f32.xlu0 %v1014
        %v1018 = vpop.xlane.xlu0 %1017
        %v1019 = vmul.f32 %v1016, 0.03125
        %v1020 = vmul.f32 %v1018, 0.03125
        %v1021 = vadd.f32 %v1019, 1e-05
        %v1022 = vadd.f32 %v1020, 1e-05
        %v1023 = vrsqrt.pop %v1021
        %v1024 = vrsqrt.pop %v1022
        %v1025 = vmul.f32 %v1011, %v1023
        %v1026 = vmul.f32 %v1012, %v1024
        %v1028 = vlaneseq
        %v1029 = vshrl.u32 %v1028, 7
        %v1030 = vsub.s32 0, %v1029
        %v1031 = vrot.slane %v999, %v1030
        %v1033 = vmul.f32 %v1025, %v1031
        %v1034 = vmul.f32 %v1026, %v1031
        %v1036 = vlaneseq
        %v1037 = vshrl.u32 %v1036, 7
        %v1038 = vsub.s32 0, %v1037
        %v1039 = vrot.slane %v1000, %v1038
        %v1041 = vadd.f32 %v1033, %v1039
        %v1042 = vadd.f32 %v1034, %v1039
        %v1043 = vpack.c.bf16 %v1042, %v1041
        %v1044 = vld [vmem:[%s650] sm:$0xf]
        %v1045 = vld [vmem:[%s650 + $0x4] sm:$0xf]
        %v1046 = vld [vmem:[%s650 + $0x8] sm:$0xf]
        %v1047 = vld [vmem:[%s650 + $0xc] sm:$0xf]
        %v1048 = vld [vmem:[%s650 + $0x10] sm:$0xf]
        %v1049 = vld [vmem:[%s650 + $0x14] sm:$0xf]
        %v1050 = vld [vmem:[%s650 + $0x18] sm:$0xf]
        %v1051 = vld [vmem:[%s650 + $0x1c] sm:$0xf]
        %v1052 = vld [vmem:[%s650 + $0x20] sm:$0xf]
        %v1053 = vld [vmem:[%s650 + $0x24] sm:$0xf]
        %v1054 = vld [vmem:[%s650 + $0x28] sm:$0xf]
        %v1055 = vld [vmem:[%s650 + $0x2c] sm:$0xf]
        %v1056 = vld [vmem:[%s650 + $0x30] sm:$0xf]
        %v1057 = vld [vmem:[%s650 + $0x34] sm:$0xf]
        %v1058 = vld [vmem:[%s650 + $0x38] sm:$0xf]
        %v1059 = vld [vmem:[%s650 + $0x3c] sm:$0xf]
        %v1060 = vld [vmem:[%s742] sm:$0x1]
        %v1062 = vlaneseq
        %v1063 = vshrl.u32 %v1062, 7
        %v1064 = vsub.s32 0, %v1063
        %v1065 = vrot.slane %v1060, %v1064
        %v1083 = vunpack.c.l.b16 %v1044
        %v1084 = vunpack.c.l.b16 %v1045
        %v1085 = vunpack.c.l.b16 %v1046
        %v1086 = vunpack.c.l.b16 %v1047
        %v1087 = vunpack.c.l.b16 %v1048
        %v1088 = vunpack.c.l.b16 %v1049
        %v1089 = vunpack.c.l.b16 %v1050
        %v1090 = vunpack.c.l.b16 %v1051
        %v1091 = vunpack.c.l.b16 %v1052
        %v1092 = vunpack.c.l.b16 %v1053
        %v1093 = vunpack.c.l.b16 %v1054
        %v1094 = vunpack.c.l.b16 %v1055
        %v1095 = vunpack.c.l.b16 %v1056
        %v1096 = vunpack.c.l.b16 %v1057
        %v1097 = vunpack.c.l.b16 %v1058
        %v1098 = vunpack.c.l.b16 %v1059
        %v1099 = vpack.c.b16 %v1084, %v1083
        %v1100 = vpack.c.b16 %v1086, %v1085
        %v1101 = vpack.c.b16 %v1088, %v1087
        %v1102 = vpack.c.b16 %v1090, %v1089
        %v1103 = vpack.c.b16 %v1092, %v1091
        %v1104 = vpack.c.b16 %v1094, %v1093
        %v1105 = vpack.c.b16 %v1096, %v1095
        %v1106 = vpack.c.b16 %v1098, %v1097
        %1115 = vmatprep.subr.bf16.mxu0 0
        %1116 = vmatpush1.bf16.msra.mxu0 %v1106
        %1117 = vmatprep.subr.bf16.mxu0 0
        %1118 = vmatpush1.bf16.msra.mxu0 %v1105
        %1119 = vmatprep.subr.bf16.mxu0 0
        %1120 = vmatpush1.bf16.msra.mxu0 %v1104
        %1121 = vmatprep.subr.bf16.mxu0 0
        %1122 = vmatpush1.bf16.msra.mxu0 %v1103
        %1123 = vmatprep.subr.bf16.mxu0 0
        %1124 = vmatpush1.bf16.msra.mxu0 %v1102
        %1125 = vmatprep.subr.bf16.mxu0 0
        %1126 = vmatpush1.bf16.msra.mxu0 %v1101
        %1127 = vmatprep.subr.bf16.mxu0 0
        %1128 = vmatpush1.bf16.msra.mxu0 %v1100
        %1129 = vmatprep.subr.bf16.mxu0 0
        %1130 = vmatpush1.bf16.msra.mxu0 %v1099
        %1131 = vmatprep.subr.bf16.mxu0 0
        %1132 = vmatpush2.bf16.msra.mxu0 0
        %1133 = vmatprep.subr.bf16.mxu0 0
        %1134 = vmatpush2.bf16.msra.mxu0 0
        %1135 = vmatprep.subr.bf16.mxu0 0
        %1136 = vmatpush2.bf16.msra.mxu0 0
        %1137 = vmatprep.subr.bf16.mxu0 0
        %1138 = vmatpush2.bf16.msra.mxu0 0
        %1139 = vmatprep.subr.bf16.mxu0 0
        %1140 = vmatpush2.bf16.msra.mxu0 0
        %1141 = vmatprep.subr.bf16.mxu0 0
        %1142 = vmatpush2.bf16.msra.mxu0 0
        %1143 = vmatprep.subr.bf16.mxu0 0
        %1144 = vmatpush2.bf16.msra.mxu0 0
        %1145 = vmatprep.subr.bf16.mxu0 0
        %1146 = vmatpush2.bf16.msra.mxu0 0
        %1147 = vmatprep.mubr.bf16.mxu0 0
        %1148 = vmatmul.mubr.bf16.gmra.mxu0 %v1043
        %v1149 = vpop.f32.mrf.mxu0
        %v1150 = vadd.f32 %v1065, %v1149
        %v1151 = vpop.f32.mrf.mxu0
        %v1152 = vpop.f32.mrf.mxu0
        %v1153 = vadd.f32 %v1065, %v1152
        %v1154 = vpop.f32.mrf.mxu0
        %1155 = vdwg.mxu0
        %v1156 = vmax.f32 %v1150, 0.0
        %v1157 = vmax.f32 %v1153, 0.0
        %v1158 = vpack.c.bf16 %v1157, %v1156
        %v1159 = vld [vmem:[%s659] sm:$0xf]
        %v1160 = vld [vmem:[%s659 + $0x4] sm:$0xf]
        %v1161 = vld [vmem:[%s659 + $0x8] sm:$0xf]
        %v1162 = vld [vmem:[%s659 + $0xc] sm:$0xf]
        %v1163 = vld [vmem:[%s659 + $0x10] sm:$0xf]
        %v1164 = vld [vmem:[%s659 + $0x14] sm:$0xf]
        %v1165 = vld [vmem:[%s659 + $0x18] sm:$0xf]
        %v1166 = vld [vmem:[%s659 + $0x1c] sm:$0xf]
        %v1167 = vld [vmem:[%s659 + $0x20] sm:$0xf]
        %v1168 = vld [vmem:[%s659 + $0x24] sm:$0xf]
        %v1169 = vld [vmem:[%s659 + $0x28] sm:$0xf]
        %v1170 = vld [vmem:[%s659 + $0x2c] sm:$0xf]
        %v1171 = vld [vmem:[%s659 + $0x30] sm:$0xf]
        %v1172 = vld [vmem:[%s659 + $0x34] sm:$0xf]
        %v1173 = vld [vmem:[%s659 + $0x38] sm:$0xf]
        %v1174 = vld [vmem:[%s659 + $0x3c] sm:$0xf]
        %v1175 = vld [vmem:[%s745] sm:$0x1]
        %v1177 = vlaneseq
        %v1178 = vshrl.u32 %v1177, 7
        %v1179 = vsub.s32 0, %v1178
        %v1180 = vrot.slane %v1175, %v1179
        %v1198 = vunpack.c.l.b16 %v1159
        %v1199 = vunpack.c.l.b16 %v1160
        %v1200 = vunpack.c.l.b16 %v1161
        %v1201 = vunpack.c.l.b16 %v1162
        %v1202 = vunpack.c.l.b16 %v1163
        %v1203 = vunpack.c.l.b16 %v1164
        %v1204 = vunpack.c.l.b16 %v1165
        %v1205 = vunpack.c.l.b16 %v1166
        %v1206 = vunpack.c.l.b16 %v1167
        %v1207 = vunpack.c.l.b16 %v1168
        %v1208 = vunpack.c.l.b16 %v1169
        %v1209 = vunpack.c.l.b16 %v1170
        %v1210 = vunpack.c.l.b16 %v1171
        %v1211 = vunpack.c.l.b16 %v1172
        %v1212 = vunpack.c.l.b16 %v1173
        %v1213 = vunpack.c.l.b16 %v1174
        %v1214 = vpack.c.b16 %v1199, %v1198
        %v1215 = vpack.c.b16 %v1201, %v1200
        %v1216 = vpack.c.b16 %v1203, %v1202
        %v1217 = vpack.c.b16 %v1205, %v1204
        %v1218 = vpack.c.b16 %v1207, %v1206
        %v1219 = vpack.c.b16 %v1209, %v1208
        %v1220 = vpack.c.b16 %v1211, %v1210
        %v1221 = vpack.c.b16 %v1213, %v1212
        %1230 = vmatprep.subr.bf16.mxu0 0
        %1231 = vmatpush1.bf16.msra.mxu0 %v1221
        %1232 = vmatprep.subr.bf16.mxu0 0
        %1233 = vmatpush1.bf16.msra.mxu0 %v1220
        %1234 = vmatprep.subr.bf16.mxu0 0
        %1235 = vmatpush1.bf16.msra.mxu0 %v1219
        %1236 = vmatprep.subr.bf16.mxu0 0
        %1237 = vmatpush1.bf16.msra.mxu0 %v1218
        %1238 = vmatprep.subr.bf16.mxu0 0
        %1239 = vmatpush1.bf16.msra.mxu0 %v1217
        %1240 = vmatprep.subr.bf16.mxu0 0
        %1241 = vmatpush1.bf16.msra.mxu0 %v1216
        %1242 = vmatprep.subr.bf16.mxu0 0
        %1243 = vmatpush1.bf16.msra.mxu0 %v1215
        %1244 = vmatprep.subr.bf16.mxu0 0
        %1245 = vmatpush1.bf16.msra.mxu0 %v1214
        %1246 = vmatprep.subr.bf16.mxu0 0
        %1247 = vmatpush2.bf16.msra.mxu0 0
        %1248 = vmatprep.subr.bf16.mxu0 0
        %1249 = vmatpush2.bf16.msra.mxu0 0
        %1250 = vmatprep.subr.bf16.mxu0 0
        %1251 = vmatpush2.bf16.msra.mxu0 0
        %1252 = vmatprep.subr.bf16.mxu0 0
        %1253 = vmatpush2.bf16.msra.mxu0 0
        %1254 = vmatprep.subr.bf16.mxu0 0
        %1255 = vmatpush2.bf16.msra.mxu0 0
        %1256 = vmatprep.subr.bf16.mxu0 0
        %1257 = vmatpush2.bf16.msra.mxu0 0
        %1258 = vmatprep.subr.bf16.mxu0 0
        %1259 = vmatpush2.bf16.msra.mxu0 0
        %1260 = vmatprep.subr.bf16.mxu0 0
        %1261 = vmatpush2.bf16.msra.mxu0 0
        %1262 = vmatprep.mubr.bf16.mxu0 0
        %1263 = vmatmul.mubr.bf16.gmra.mxu0 %v1158
        %v1264 = vpop.f32.mrf.mxu0
        %v1265 = vadd.f32 %v1180, %v1264
        %v1266 = vpop.f32.mrf.mxu0
        %v1267 = vpop.f32.mrf.mxu0
        %v1268 = vadd.f32 %v1180, %v1267
        %v1269 = vpop.f32.mrf.mxu0
        %1270 = vdwg.mxu0
        %v1271 = vld [vmem:[%s754] sm:$0x1]
        %v1272 = vld [vmem:[%s757] sm:$0x1]
        %v1273 = vadd.f32 %v1041, %v1265
        %v1274 = vadd.f32 %v1042, %v1268
        %1275 = vadd.xlane.f32.xlu0 %v1273
        %v1276 = vpop.xlane.xlu0 %1275
        %1277 = vadd.xlane.f32.xlu0 %v1274
        %v1278 = vpop.xlane.xlu0 %1277
        %v1279 = vmul.f32 %v1276, 0.03125
        %v1280 = vmul.f32 %v1278, 0.03125
        %v1281 = vsub.f32 %v1273, %v1279
        %v1282 = vsub.f32 %v1274, %v1280
        %v1283 = vsel %vm885, %v1281, 0.0
        %v1284 = vsel %vm885, %v1282, 0.0
        %v1285 = vmul.f32 %v1283, %v1283
        %v1286 = vmul.f32 %v1284, %v1284
        %1287 = vadd.xlane.f32.xlu0 %v1285
        %v1288 = vpop.xlane.xlu0 %1287
        %1289 = vadd.xlane.f32.xlu0 %v1286
        %v1290 = vpop.xlane.xlu0 %1289
        %v1291 = vmul.f32 %v1288, 0.03125
        %v1292 = vmul.f32 %v1290, 0.03125
        %v1293 = vadd.f32 %v1291, 1e-05
        %v1294 = vadd.f32 %v1292, 1e-05
        %v1295 = vrsqrt.pop %v1293
        %v1296 = vrsqrt.pop %v1294
        %v1297 = vmul.f32 %v1283, %v1295
        %v1298 = vmul.f32 %v1284, %v1296
        %v1300 = vlaneseq
        %v1301 = vshrl.u32 %v1300, 7
        %v1302 = vsub.s32 0, %v1301
        %v1303 = vrot.slane %v1271, %v1302
        %v1305 = vmul.f32 %v1297, %v1303
        %v1306 = vmul.f32 %v1298, %v1303
        %v1308 = vlaneseq
        %v1309 = vshrl.u32 %v1308, 7
        %v1310 = vsub.s32 0, %v1309
        %v1311 = vrot.slane %v1272, %v1310
        %v1313 = vadd.f32 %v1305, %v1311
        %v1314 = vadd.f32 %v1306, %v1311
        %1315 = vst [vmem:[#allocation2] sm:$0xff] %v1313
        %1316 = vst [vmem:[#allocation2 + $0x8] sm:$0xff] %v1314
        %p1317 = scmp.eq.s32.totalorder %s40, 2
        // Predicated region
        $region113: #{tpu_custom_call.1} parent=79 // pred_check
          %p1318 = pneg %p1317
        $region114: #{tpu_custom_call.1} parent=79 // pred_check_branch
          %1320 = sbr.rel (%p1318) target = $region116
        $region115: #{tpu_custom_call.1} parent=79 // pred_region
          %v1321 = vpack.c.bf16 %v1314, %v1313
          %v1322 = vld [vmem:[#allocation14] sm:$0xf]
          %v1323 = vld [vmem:[#allocation14 + $0x4] sm:$0xf]
          %v1324 = vld [vmem:[#allocation14 + $0x8] sm:$0xf]
          %v1325 = vld [vmem:[#allocation14 + $0xc] sm:$0xf]
          %v1326 = vld [vmem:[#allocation14 + $0x10] sm:$0xf]
          %v1327 = vld [vmem:[#allocation14 + $0x14] sm:$0xf]
          %v1328 = vld [vmem:[#allocation14 + $0x18] sm:$0xf]
          %v1329 = vld [vmem:[#allocation14 + $0x1c] sm:$0xf]
          %v1330 = vld [vmem:[#allocation14 + $0x20] sm:$0xf]
          %v1331 = vld [vmem:[#allocation14 + $0x24] sm:$0xf]
          %v1332 = vld [vmem:[#allocation14 + $0x28] sm:$0xf]
          %v1333 = vld [vmem:[#allocation14 + $0x2c] sm:$0xf]
          %v1334 = vld [vmem:[#allocation14 + $0x30] sm:$0xf]
          %v1335 = vld [vmem:[#allocation14 + $0x34] sm:$0xf]
          %v1336 = vld [vmem:[#allocation14 + $0x38] sm:$0xf]
          %v1337 = vld [vmem:[#allocation14 + $0x3c] sm:$0xf]
          %v1338 = vld [vmem:[%s14] sm:$0x1]
          %v1340 = vlaneseq
          %v1341 = vshrl.u32 %v1340, 7
          %v1342 = vsub.s32 0, %v1341
          %v1343 = vrot.slane %v1338, %v1342
          %v1361 = vunpack.c.l.b16 %v1322
          %v1362 = vunpack.c.l.b16 %v1323
          %v1363 = vunpack.c.l.b16 %v1324
          %v1364 = vunpack.c.l.b16 %v1325
          %v1365 = vunpack.c.l.b16 %v1326
          %v1366 = vunpack.c.l.b16 %v1327
          %v1367 = vunpack.c.l.b16 %v1328
          %v1368 = vunpack.c.l.b16 %v1329
          %v1369 = vunpack.c.l.b16 %v1330
          %v1370 = vunpack.c.l.b16 %v1331
          %v1371 = vunpack.c.l.b16 %v1332
          %v1372 = vunpack.c.l.b16 %v1333
          %v1373 = vunpack.c.l.b16 %v1334
          %v1374 = vunpack.c.l.b16 %v1335
          %v1375 = vunpack.c.l.b16 %v1336
          %v1376 = vunpack.c.l.b16 %v1337
          %v1377 = vpack.c.b16 %v1362, %v1361
          %v1378 = vpack.c.b16 %v1364, %v1363
          %v1379 = vpack.c.b16 %v1366, %v1365
          %v1380 = vpack.c.b16 %v1368, %v1367
          %v1381 = vpack.c.b16 %v1370, %v1369
          %v1382 = vpack.c.b16 %v1372, %v1371
          %v1383 = vpack.c.b16 %v1374, %v1373
          %v1384 = vpack.c.b16 %v1376, %v1375
          %1393 = vmatprep.subr.bf16.mxu0 0
          %1394 = vmatpush1.bf16.msra.mxu0 %v1384
          %1395 = vmatprep.subr.bf16.mxu0 0
          %1396 = vmatpush1.bf16.msra.mxu0 %v1383
          %1397 = vmatprep.subr.bf16.mxu0 0
          %1398 = vmatpush1.bf16.msra.mxu0 %v1382
          %1399 = vmatprep.subr.bf16.mxu0 0
          %1400 = vmatpush1.bf16.msra.mxu0 %v1381
          %1401 = vmatprep.subr.bf16.mxu0 0
          %1402 = vmatpush1.bf16.msra.mxu0 %v1380
          %1403 = vmatprep.subr.bf16.mxu0 0
          %1404 = vmatpush1.bf16.msra.mxu0 %v1379
          %1405 = vmatprep.subr.bf16.mxu0 0
          %1406 = vmatpush1.bf16.msra.mxu0 %v1378
          %1407 = vmatprep.subr.bf16.mxu0 0
          %1408 = vmatpush1.bf16.msra.mxu0 %v1377
          %1409 = vmatprep.subr.bf16.mxu0 0
          %1410 = vmatpush2.bf16.msra.mxu0 0
          %1411 = vmatprep.subr.bf16.mxu0 0
          %1412 = vmatpush2.bf16.msra.mxu0 0
          %1413 = vmatprep.subr.bf16.mxu0 0
          %1414 = vmatpush2.bf16.msra.mxu0 0
          %1415 = vmatprep.subr.bf16.mxu0 0
          %1416 = vmatpush2.bf16.msra.mxu0 0
          %1417 = vmatprep.subr.bf16.mxu0 0
          %1418 = vmatpush2.bf16.msra.mxu0 0
          %1419 = vmatprep.subr.bf16.mxu0 0
          %1420 = vmatpush2.bf16.msra.mxu0 0
          %1421 = vmatprep.subr.bf16.mxu0 0
          %1422 = vmatpush2.bf16.msra.mxu0 0
          %1423 = vmatprep.subr.bf16.mxu0 0
          %1424 = vmatpush2.bf16.msra.mxu0 0
          %1425 = vmatprep.mubr.bf16.mxu0 0
          %1426 = vmatmul.mubr.bf16.gmra.mxu0 %v1321
          %v1427 = vpop.f32.mrf.mxu0
          %v1428 = vadd.f32 %v1343, %v1427
          %v1429 = vpop.f32.mrf.mxu0
          %v1430 = vpop.f32.mrf.mxu0
          %v1431 = vadd.f32 %v1343, %v1430
          %v1432 = vpop.f32.mrf.mxu0
          %1433 = vdwg.mxu0
          %1434 = vst [vmem:[#allocation15] sm:$0xff] %v1428
          %1435 = vst [vmem:[#allocation15 + $0x8] sm:$0xff] %v1431
        $region116: #{tpu_custom_call.1} parent=79 // pred_fallthru
          _
        // Predicated region
        $region117: #{tpu_custom_call.1} parent=79 // pred_check
          %p1436 = pneg %p435
        $region118: #{tpu_custom_call.1} parent=79 // pred_check_branch
          %1438 = sbr.rel (%p1436) target = $region120
        $region119: #{tpu_custom_call.1} parent=79 // pred_region
          %s1439 = smul.u32 2, %s39
          %s1441 = ssub.s32 256, 256
          %1442 = vsyncadd [#allocation5], %s1441
          %s1443 = smul.addr %s1439, 128
          %s1444 = scalar_lea.hbm %s15, %s1443
          %s1445 = sshll.u32 [#allocation15], 4
          %s1446 = int_to_ptr.vmem [resolvable:$true] %s1445
          %1451 = dma.vmem_to_hbm [thread:$0]  %s1446, 256, %s1444, [#allocation5], 128, 128, 8
        $region120: #{tpu_custom_call.1} parent=79 // pred_fallthru
          _
        // Predicated region
        $region121: #{tpu_custom_call.1} parent=79 // pred_check
          %p1452 = pneg %p435
        $region122: #{tpu_custom_call.1} parent=79 // pred_check_branch
          %1454 = sbr.rel (%p1452) target = $region124
        $region123: #{tpu_custom_call.1} parent=79 // pred_region
          %1455 = dma.done [#allocation5], 256
        $region124: #{tpu_custom_call.1} parent=79 // pred_fallthru
          _
      $region80: #{tpu_custom_call.1} parent=5 // pred_fallthru
        _
      %p1456 = scmp.le.s32.totalorder 2, %s30
      // Predicated region
      $region125: #{tpu_custom_call.1} parent=5 // pred_check
        %p1457 = pneg %p1456
      $region126: #{tpu_custom_call.1} parent=5 // pred_check_branch
        %1459 = sbr.rel (%p1457) target = $region128
      $region127: #{tpu_custom_call.1} parent=5 // pred_region
        %s1460 = ssub.s32 %s30, 2
      $region128: #{tpu_custom_call.1} parent=5 // pred_fallthru
        _
    $region6: #{tpu_custom_call.1} parent=1 // loop_footer
      %s34 = sadd.s32 1, %s30
    $region7: #{tpu_custom_call.1} parent=1 // loop_footer_branch
      %29 = sbr.rel target = $region3
    $region8: #{tpu_custom_call.1} parent=1 // loop_exit
      _
    %1461 = vsyncpa [#allocation4], 1
    %s1462 = scalar_lea.sflag [#allocation4], 1
    %1463 = vsyncpa %s1462, 1
    %1464 = vsyncpa [#allocation7], 1
    %1465 = vsyncpa [#allocation10], 1
    %s1466 = scalar_lea.sflag [#allocation10], 1
    %1467 = vsyncpa %s1466, 1
    %1468 = vsyncpa [#allocation13], 1
    %s1469 = scalar_lea.sflag [#allocation13], 1
    %1470 = vsyncpa %s1469, 1
    %1471 = vsyncpa [#allocation5], 1
    %s1472 = scalar_lea.sflag [#allocation5], 1
    %1473 = vsyncpa %s1472, 1

</llo_original>
